<compile_context>
chip_gen: v7x
topology: tpu7x:2x2x1
jax: 0.10.0
libtpu: 0.0.40
codegen_flags: <defaults>
</compile_context>

<pallas_src>
import functools

import numpy as np
import jax
import jax.numpy as jnp
from jax import lax
from jax.experimental import pallas as pl
from jax.experimental.pallas import tpu as pltpu


def _bilstm_kernel(xin_ref, w_in_ref, w_hh_ref, b_ref, out_ref, gx_ref, hbuf_ref, *, H):
    # xin_ref : (L, BB, 2C)  per-batch-block input, [x_t | x_{L-1-t}] on channels
    # w_in_ref: (2C, 8H)     fused input weights  (gate cols: i_f,i_b,f_f,f_b,o_f,o_b,g_f,g_b)
    # w_hh_ref: (2H, 8H)     fused recurrent weights (block structure, same cols)
    # b_ref   : (1, 8H)      fused bias (b_ih + b_hh, both directions), f32
    # out_ref : (L, BB, 2H)  hidden states, fwd in [..., :H], bwd in [..., H:]
    # gx_ref  : (L, BB, 8H)  VMEM scratch: precomputed input-side gate pre-activations
    # hbuf_ref: (L, BB, 2H)  VMEM scratch: per-step hidden rows (reversal deferred)
    L, BB, C2 = xin_ref.shape
    H2 = 2 * H
    w_in = w_in_ref[...]
    w_hh = w_hh_ref[...]
    b = b_ref[...]                       # (1, 8H) f32
    mm_dtype = w_hh.dtype

    # ---- hoisted input projection: ONE big MXU call (M = L*BB) ----------------
    # gx[t] = [x_t | x_{L-1-t}] @ W_in + b, for all t at once. Merging the leading
    # (L, BB) dims is layout-free (BB is sublane-aligned); bias is added once.
    x_all = xin_ref[...].reshape(L * BB, C2)
    gx_ref[...] = (
        jnp.dot(x_all, w_in, preferred_element_type=jnp.float32) + b
    ).reshape(L, BB, 8 * H)
    # NOTE: if gx residency ever becomes the VMEM blocker, store it in bf16
    # (it only feeds an f32 add).

    def step(t, carry):
        h, c = carry  # (BB, 2H) f32 each: [h_fwd | h_bwd], [c_fwd | c_bwd]
        # Single fused recurrent MXU op per step for both directions.
        gates = gx_ref[t] + jnp.dot(
            h.astype(mm_dtype), w_hh, preferred_element_type=jnp.float32
        )  # (BB, 8H), columns: [i | f | o | g] (each 2H wide, fwd|bwd interleaved)
        sig = jax.nn.sigmoid(gates[:, 0:3 * H2])      # one EUP dispatch: i, f, o
        g_g = jnp.tanh(gates[:, 3 * H2:4 * H2])       # one EUP dispatch: g
        i_g = sig[:, 0:H2]
        f_g = sig[:, H2:2 * H2]
        o_g = sig[:, 2 * H2:3 * H2]
        c = f_g * c + i_g * g_g
        h = o_g * jnp.tanh(c)
        # Single full-row store; the backward-time reversal is deferred to the
        # post-pass so no half-width masked store sits on the recurrence chain.
        hbuf_ref[t] = h
        return (h, c)

    zeros = jnp.zeros((BB, H2), jnp.float32)
    # Full unroll for small per-step tiles (cross-step MXU/EUP interleave);
    # cap the unroll when tiles are big enough to spill the vreg file.
    if BB * 8 * H <= 32 * 1024 and L <= 64:
        unroll = L
    else:
        unroll = min(L, 4)
    lax.fori_loop(0, L, step, (zeros, zeros), unroll=unroll)

    # ---- post-pass: bulk writes off the serial chain --------------------------
    # forward half: one bulk copy; backward half: time-reversed copy (static loop,
    # avoids relying on lax.rev lowering).
    out_ref[:, :, 0:H] = hbuf_ref[:, :, 0:H]
    for t in range(L):
        out_ref[t, :, H:H2] = hbuf_ref[L - 1 - t, :, H:H2]


def _fuse_params(wih_f, whh_f, b_f, wih_b, whh_b, b_b):
    """Fused weights with gate-column layout [i_f,i_b,f_f,f_b,o_f,o_b,g_f,g_b].

    Sigmoid gates (i, f, o) are contiguous so the kernel issues one sigmoid over
    gates[:, :6H] and one tanh over gates[:, 6H:8H].
    """
    fourH, C = wih_f.shape
    H = fourH // 4
    w_in = jnp.zeros((2 * C, 8 * H), jnp.float32)
    w_hh = jnp.zeros((2 * H, 8 * H), jnp.float32)
    b_c = jnp.zeros((8 * H,), jnp.float32)
    # torch gate rows: i(0), f(1), g(2), o(3) -> fused column groups: i, f, o, g
    col_group = {0: 0, 1: 1, 2: 3, 3: 2}
    for k in range(4):
        cg = col_group[k]
        rk = slice(k * H, (k + 1) * H)
        cf = slice((2 * cg) * H, (2 * cg + 1) * H)      # forward columns of gate k
        cb = slice((2 * cg + 1) * H, (2 * cg + 2) * H)  # backward columns of gate k
        w_in = w_in.at[0:C, cf].set(wih_f[rk].T)
        w_in = w_in.at[C:2 * C, cb].set(wih_b[rk].T)
        w_hh = w_hh.at[0:H, cf].set(whh_f[rk].T)
        w_hh = w_hh.at[H:2 * H, cb].set(whh_b[rk].T)
        b_c = b_c.at[cf].set(b_f[rk])
        b_c = b_c.at[cb].set(b_b[rk])
    return w_in, w_hh, b_c.reshape(1, 8 * H)


def _is_dual_tensorcore_chip():
    try:
        kind = jax.devices()[0].device_kind.lower()
    except Exception:
        return False
    return "v7" in kind


def _vmem_budget_bytes():
    try:
        cap = int(pltpu.get_tpu_info().vmem_capacity_bytes)
        return int(cap * 3 // 4)
    except Exception:
        return 48 << 20  # conservative: fits v7x's 64 MiB physical VMEM


def _block_vmem_bytes(L, BB, C, H, mm_bytes):
    gx = L * BB * 8 * H * 4                     # f32 scratch
    hbuf = L * BB * 2 * H * 4                   # f32 scratch
    xin_blk = 2 * L * BB * 2 * C * mm_bytes     # double-buffered input block
    out_blk = 2 * L * BB * 2 * H * 4            # double-buffered output block
    weights = 2 * ((2 * C) * 8 * H + (2 * H) * 8 * H) * mm_bytes + 2 * 8 * H * 4
    return gx + hbuf + xin_blk + out_blk + weights


def _pick_n_blocks(B, L, C, H, mm_bytes, budget):
    def valid(nb):
        return nb >= 1 and B % nb == 0 and ((B // nb) % 8 == 0 or nb == 1)

    # Only shard the batch across blocks on dual-TC chips (v7x); on v5e/v6e the
    # grid is a serial loop, so splitting just halves MXU sublane fill.
    nb = 2 if (_is_dual_tensorcore_chip() and valid(2)) else 1
    # Grow the split only if a block does not fit the VMEM budget.
    while _block_vmem_bytes(L, B // nb, C, H, mm_bytes) > budget:
        nxt = nb * 2
        if nxt > B or not valid(nxt):
            break
        nb = nxt
    return nb


def rnn_forward(x, params, *, matmul_dtype=jnp.bfloat16):
    """x: (n_samples, n_channels, lookback, n_assets) -> (n_samples, 2H, lookback, n_assets).

    matmul_dtype=bfloat16 (default) drives the MXU at native throughput on all
    generations; f32 state / accumulation / elementwise chain are kept either way.
    Use matmul_dtype=jnp.float32 for bit-tight parity with the reference.
    """
    N, C, L, A = x.shape
    wih_f, whh_f, b_f, wih_b, whh_b, b_b = params
    H = whh_f.shape[1]
    B = N * A

    w_in, w_hh, b_c = _fuse_params(wih_f, whh_f, b_f, wih_b, whh_b, b_b)

    # (N, C, L, A) -> (L, N*A, C): fold samples into the LSTM batch axis.
    x_sw = jnp.transpose(x, (2, 0, 3, 1)).reshape(L, B, C)
    # Fold the backward direction's time reversal into the channel axis.
    xin = jnp.concatenate([x_sw, x_sw[::-1]], axis=-1)  # (L, B, 2C)

    xin = xin.astype(matmul_dtype)
    w_in = w_in.astype(matmul_dtype)
    w_hh = w_hh.astype(matmul_dtype)
    mm_bytes = jnp.dtype(matmul_dtype).itemsize

    budget = _vmem_budget_bytes()
    n_blocks = _pick_n_blocks(B, L, C, H, mm_bytes, budget)
    BB = B // n_blocks
    need = _block_vmem_bytes(L, BB, C, H, mm_bytes)
    vmem_limit = int(min(max(2 * need, 32 << 20), max(budget, 32 << 20)))

    kernel = functools.partial(_bilstm_kernel, H=H)
    out = pl.pallas_call(
        kernel,
        out_shape=jax.ShapeDtypeStruct((L, B, 2 * H), jnp.float32),
        grid_spec=pltpu.PrefetchScalarGridSpec(
            num_scalar_prefetch=0,
            grid=(n_blocks,),
            in_specs=[
                pl.BlockSpec((L, BB, 2 * C), lambda g: (0, g, 0)),
                pl.BlockSpec((2 * C, 8 * H), lambda g: (0, 0)),
                pl.BlockSpec((2 * H, 8 * H), lambda g: (0, 0)),
                pl.BlockSpec((1, 8 * H), lambda g: (0, 0)),
            ],
            out_specs=pl.BlockSpec((L, BB, 2 * H), lambda g: (0, g, 0)),
            scratch_shapes=[
                pltpu.VMEM((L, BB, 8 * H), jnp.float32),  # gx: input-side gate preacts
                pltpu.VMEM((L, BB, 2 * H), jnp.float32),  # hbuf: per-step hidden rows
            ],
        ),
        compiler_params=pltpu.CompilerParams(
            dimension_semantics=("parallel",),
            vmem_limit_bytes=vmem_limit,
        ),
    )(xin, w_in, w_hh, b_c)

    # (L, N*A, 2H) -> (N, 2H, L, A): the single remaining layout op.
    out = out.reshape(L, N, A, 2 * H)
    return jnp.transpose(out, (1, 3, 0, 2))


def rnn_reference(x, params):
    """Pure-JAX reference matching torch.nn.LSTM(bidirectional=True, num_layers=1)."""
    N, C, L, A = x.shape
    wih_f, whh_f, b_f, wih_b, whh_b, b_b = params
    H = whh_f.shape[1]
    x_sw = jnp.transpose(x, (0, 2, 3, 1))  # (N, L, A, C)

    def run_dir(seq, wih, whh, b):
        def step(carry, x_t):
            h, c = carry
            gates = x_t @ wih.T + h @ whh.T + b
            i = jax.nn.sigmoid(gates[:, 0:H])
            f = jax.nn.sigmoid(gates[:, H:2 * H])
            g = jnp.tanh(gates[:, 2 * H:3 * H])
            o = jax.nn.sigmoid(gates[:, 3 * H:4 * H])
            c = f * c + i * g
            h = o * jnp.tanh(c)
            return (h, c), h
        init = (jnp.zeros((A, H), jnp.float32), jnp.zeros((A, H), jnp.float32))
        _, hs = lax.scan(step, init, seq)
        return hs  # (L, A, H)

    outs = []
    for i in range(N):
        hf = run_dir(x_sw[i], wih_f, whh_f, b_f)
        hb = run_dir(x_sw[i][::-1], wih_b, whh_b, b_b)[::-1]
        outs.append(jnp.concatenate([hf, hb], axis=-1))
    out = jnp.stack(outs)  # (N, L, A, 2H)
    return jnp.transpose(out, (0, 3, 1, 2))


if __name__ == "__main__":
    # Module input: (n_samples, n_channels, lookback, n_assets); hidden_size=32
    # bidirectional -> H per direction = 16.
    N, C, L, A = 2, 4, 8, 16
    hidden_size = 32
    H = hidden_size // 2

    key = jax.random.PRNGKey(0)
    keys = jax.random.split(key, 9)
    k = 1.0 / (H ** 0.5)

    def uni(kk, shape):
        return jax.random.uniform(kk, shape, jnp.float32, -k, k)

    # PyTorch LSTM parameter shapes (gate order i, f, g, o); b = b_ih + b_hh.
    wih_f = uni(keys[0], (4 * H, C))
    whh_f = uni(keys[1], (4 * H, H))
    b_f = uni(keys[2], (4 * H,)) + uni(keys[3], (4 * H,))
    wih_b = uni(keys[4], (4 * H, C))
    whh_b = uni(keys[5], (4 * H, H))
    b_b = uni(keys[6], (4 * H,)) + uni(keys[7], (4 * H,))
    params = (wih_f, whh_f, b_f, wih_b, whh_b, b_b)

    x = jax.random.normal(keys[8], (N, C, L, A), jnp.float32)

    ref = rnn_reference(x, params)

    # Default fast path: bf16 MXU operands, f32 accumulation/state.
    out_fast = jax.jit(rnn_forward)(x, params)
    jax.block_until_ready(out_fast)
    assert out_fast.shape == (N, hidden_size, L, A), out_fast.shape
    np.testing.assert_allclose(np.asarray(out_fast), np.asarray(ref), rtol=1e-1, atol=1e-1)

    # Bit-tight parity path (f32 matmuls).
    out_f32 = jax.jit(functools.partial(rnn_forward, matmul_dtype=jnp.float32))(x, params)
    jax.block_until_ready(out_f32)
    assert out_f32.shape == (N, hidden_size, L, A), out_f32.shape
    np.testing.assert_allclose(np.asarray(out_f32), np.asarray(ref), rtol=1e-4, atol=1e-4)

    print("KERNEL_OK")
</pallas_src>

<mosaic_0001>
module attributes {stable_mosaic.version = 11 : i64} {
  func.func @_bilstm_kernel(%arg0: i32, %arg1: memref<8x32x8xbf16, #tpu.memory_space<vmem>>, %arg2: memref<8x128xbf16, #tpu.memory_space<vmem>>, %arg3: memref<32x128xbf16, #tpu.memory_space<vmem>>, %arg4: memref<1x128xf32, #tpu.memory_space<vmem>>, %arg5: memref<8x32x32xf32, #tpu.memory_space<vmem>>, %arg6: memref<8x32x128xf32, #tpu.memory_space<vmem>>, %arg7: memref<8x32x32xf32, #tpu.memory_space<vmem>>) attributes {dimension_semantics = [#tpu.dimension_semantics<parallel>], iteration_bounds = array<i64: 1>, scalar_prefetch = 0 : i64, scratch_operands = 2 : i64, tpu.core_type = #tpu.core_type<tc>, window_params = [{transform_indices = @transform_0, window_bounds = array<i64: 8, 32, 8>}, {pipeline_mode = #tpu.pipeline_mode<synchronous>, transform_indices = @transform_1, window_bounds = array<i64: 8, 128>}, {pipeline_mode = #tpu.pipeline_mode<synchronous>, transform_indices = @transform_2, window_bounds = array<i64: 32, 128>}, {pipeline_mode = #tpu.pipeline_mode<synchronous>, transform_indices = @transform_3, window_bounds = array<i64: 1, 128>}, {transform_indices = @transform_4, window_bounds = array<i64: 8, 32, 32>}]} {
    %c0 = arith.constant 0 : index
    %c0_0 = arith.constant 0 : index
    %0 = vector.load %arg2[%c0, %c0_0] : memref<8x128xbf16, #tpu.memory_space<vmem>>, vector<8x128xbf16>
    %c0_1 = arith.constant 0 : index
    %c0_2 = arith.constant 0 : index
    %1 = vector.load %arg3[%c0_1, %c0_2] : memref<32x128xbf16, #tpu.memory_space<vmem>>, vector<32x128xbf16>
    %c0_3 = arith.constant 0 : index
    %c0_4 = arith.constant 0 : index
    %2 = vector.load %arg4[%c0_3, %c0_4] : memref<1x128xf32, #tpu.memory_space<vmem>>, vector<1x128xf32>
    %c0_5 = arith.constant 0 : index
    %c0_6 = arith.constant 0 : index
    %c0_7 = arith.constant 0 : index
    %3 = vector.load %arg1[%c0_5, %c0_6, %c0_7] : memref<8x32x8xbf16, #tpu.memory_space<vmem>>, vector<8x32x8xbf16>
    %4 = vector.shape_cast %3 : vector<8x32x8xbf16> to vector<256x8xbf16>
    %cst = arith.constant dense<0.000000e+00> : vector<256x128xf32>
    %5 = tpu.matmul %4, %0, %cst {dimension_numbers = #tpu.dot_dimension_numbers<[1], [0], [0], [1], [0, 0, 1, 1], [], []>} : vector<256x8xbf16>, vector<8x128xbf16>, vector<256x128xf32> -> vector<256x128xf32>
    %6 = vector.broadcast %2 : vector<1x128xf32> to vector<256x128xf32>
    %7 = arith.addf %5, %6 : vector<256x128xf32>
    %8 = vector.shape_cast %7 : vector<256x128xf32> to vector<8x32x128xf32>
    %c0_8 = arith.constant 0 : index
    %c0_9 = arith.constant 0 : index
    %c0_10 = arith.constant 0 : index
    %9 = vector.load %arg6[%c0_8, %c0_9, %c0_10] : memref<8x32x128xf32, #tpu.memory_space<vmem>>, vector<8x32x128xf32>
    tpu.vector_store %arg6[%c0_8, %c0_9, %c0_10], %8 {strides = array<i32>} : memref<8x32x128xf32, #tpu.memory_space<vmem>>, vector<8x32x128xf32>,
    %cst_11 = arith.constant 0.000000e+00 : f32
    %10 = vector.broadcast %cst_11 : f32 to vector<32x32xf32>
    %c0_i32 = arith.constant 0 : i32
    %11 = arith.index_cast %c0_i32 : i32 to index
    %c0_12 = arith.constant 0 : index
    %c0_13 = arith.constant 0 : index
    %12 = vector.load %arg6[%11, %c0_12, %c0_13] : memref<8x32x128xf32, #tpu.memory_space<vmem>>, vector<1x32x128xf32>
    %13 = vector.shape_cast %12 : vector<1x32x128xf32> to vector<32x128xf32>
    %14 = arith.truncf %10 : vector<32x32xf32> to vector<32x32xbf16>
    %cst_14 = arith.constant dense<0.000000e+00> : vector<32x128xf32>
    %15 = tpu.matmul %14, %1, %cst_14 {dimension_numbers = #tpu.dot_dimension_numbers<[1], [0], [0], [1], [0, 0, 1, 1], [], []>} : vector<32x32xbf16>, vector<32x128xbf16>, vector<32x128xf32> -> vector<32x128xf32>
    %16 = arith.addf %13, %15 : vector<32x128xf32>
    %17 = vector.extract_strided_slice %16 {offsets = [0, 0], sizes = [32, 96], strides = [1, 1]} : vector<32x128xf32> to vector<32x96xf32>
    %18 = arith.negf %17 : vector<32x96xf32>
    %19 = math.exp %18 : vector<32x96xf32>
    %cst_15 = arith.constant 1.000000e+00 : f32
    %20 = vector.broadcast %cst_15 : f32 to vector<32x96xf32>
    %21 = arith.addf %20, %19 : vector<32x96xf32>
    %22 = arith.divf %20, %21 : vector<32x96xf32>
    %23 = vector.extract_strided_slice %16 {offsets = [0, 96], sizes = [32, 32], strides = [1, 1]} : vector<32x128xf32> to vector<32x32xf32>
    %24 = math.tanh %23 : vector<32x32xf32>
    %25 = vector.extract_strided_slice %22 {offsets = [0, 0], sizes = [32, 32], strides = [1, 1]} : vector<32x96xf32> to vector<32x32xf32>
    %26 = vector.extract_strided_slice %22 {offsets = [0, 32], sizes = [32, 32], strides = [1, 1]} : vector<32x96xf32> to vector<32x32xf32>
    %27 = vector.extract_strided_slice %22 {offsets = [0, 64], sizes = [32, 32], strides = [1, 1]} : vector<32x96xf32> to vector<32x32xf32>
    %28 = arith.mulf %26, %10 : vector<32x32xf32>
    %29 = arith.mulf %25, %24 : vector<32x32xf32>
    %30 = arith.addf %28, %29 : vector<32x32xf32>
    %31 = math.tanh %30 : vector<32x32xf32>
    %32 = arith.mulf %27, %31 : vector<32x32xf32>
    %33 = arith.index_cast %c0_i32 : i32 to index
    %c0_16 = arith.constant 0 : index
    %c0_17 = arith.constant 0 : index
    %34 = vector.load %arg7[%33, %c0_16, %c0_17] : memref<8x32x32xf32, #tpu.memory_space<vmem>>, vector<1x32x32xf32>
    %35 = vector.shape_cast %34 : vector<1x32x32xf32> to vector<32x32xf32>
    %36 = vector.shape_cast %32 : vector<32x32xf32> to vector<1x32x32xf32>
    tpu.vector_store %arg7[%33, %c0_16, %c0_17], %36 {strides = array<i32>} : memref<8x32x32xf32, #tpu.memory_space<vmem>>, vector<1x32x32xf32>,
    %c1_i32 = arith.constant 1 : i32
    %37 = arith.index_cast %c1_i32 : i32 to index
    %c0_18 = arith.constant 0 : index
    %c0_19 = arith.constant 0 : index
    %38 = vector.load %arg6[%37, %c0_18, %c0_19] : memref<8x32x128xf32, #tpu.memory_space<vmem>>, vector<1x32x128xf32>
    %39 = vector.shape_cast %38 : vector<1x32x128xf32> to vector<32x128xf32>
    %40 = arith.truncf %32 : vector<32x32xf32> to vector<32x32xbf16>
    %cst_20 = arith.constant dense<0.000000e+00> : vector<32x128xf32>
    %41 = tpu.matmul %40, %1, %cst_20 {dimension_numbers = #tpu.dot_dimension_numbers<[1], [0], [0], [1], [0, 0, 1, 1], [], []>} : vector<32x32xbf16>, vector<32x128xbf16>, vector<32x128xf32> -> vector<32x128xf32>
    %42 = arith.addf %39, %41 : vector<32x128xf32>
    %43 = vector.extract_strided_slice %42 {offsets = [0, 0], sizes = [32, 96], strides = [1, 1]} : vector<32x128xf32> to vector<32x96xf32>
    %44 = arith.negf %43 : vector<32x96xf32>
    %45 = math.exp %44 : vector<32x96xf32>
    %cst_21 = arith.constant 1.000000e+00 : f32
    %46 = vector.broadcast %cst_21 : f32 to vector<32x96xf32>
    %47 = arith.addf %46, %45 : vector<32x96xf32>
    %48 = arith.divf %46, %47 : vector<32x96xf32>
    %49 = vector.extract_strided_slice %42 {offsets = [0, 96], sizes = [32, 32], strides = [1, 1]} : vector<32x128xf32> to vector<32x32xf32>
    %50 = math.tanh %49 : vector<32x32xf32>
    %51 = vector.extract_strided_slice %48 {offsets = [0, 0], sizes = [32, 32], strides = [1, 1]} : vector<32x96xf32> to vector<32x32xf32>
    %52 = vector.extract_strided_slice %48 {offsets = [0, 32], sizes = [32, 32], strides = [1, 1]} : vector<32x96xf32> to vector<32x32xf32>
    %53 = vector.extract_strided_slice %48 {offsets = [0, 64], sizes = [32, 32], strides = [1, 1]} : vector<32x96xf32> to vector<32x32xf32>
    %54 = arith.mulf %52, %30 : vector<32x32xf32>
    %55 = arith.mulf %51, %50 : vector<32x32xf32>
    %56 = arith.addf %54, %55 : vector<32x32xf32>
    %57 = math.tanh %56 : vector<32x32xf32>
    %58 = arith.mulf %53, %57 : vector<32x32xf32>
    %59 = arith.index_cast %c1_i32 : i32 to index
    %c0_22 = arith.constant 0 : index
    %c0_23 = arith.constant 0 : index
    %60 = vector.load %arg7[%59, %c0_22, %c0_23] : memref<8x32x32xf32, #tpu.memory_space<vmem>>, vector<1x32x32xf32>
    %61 = vector.shape_cast %60 : vector<1x32x32xf32> to vector<32x32xf32>
    %62 = vector.shape_cast %58 : vector<32x32xf32> to vector<1x32x32xf32>
    tpu.vector_store %arg7[%59, %c0_22, %c0_23], %62 {strides = array<i32>} : memref<8x32x32xf32, #tpu.memory_space<vmem>>, vector<1x32x32xf32>,
    %c2_i32 = arith.constant 2 : i32
    %63 = arith.index_cast %c2_i32 : i32 to index
    %c0_24 = arith.constant 0 : index
    %c0_25 = arith.constant 0 : index
    %64 = vector.load %arg6[%63, %c0_24, %c0_25] : memref<8x32x128xf32, #tpu.memory_space<vmem>>, vector<1x32x128xf32>
    %65 = vector.shape_cast %64 : vector<1x32x128xf32> to vector<32x128xf32>
    %66 = arith.truncf %58 : vector<32x32xf32> to vector<32x32xbf16>
    %cst_26 = arith.constant dense<0.000000e+00> : vector<32x128xf32>
    %67 = tpu.matmul %66, %1, %cst_26 {dimension_numbers = #tpu.dot_dimension_numbers<[1], [0], [0], [1], [0, 0, 1, 1], [], []>} : vector<32x32xbf16>, vector<32x128xbf16>, vector<32x128xf32> -> vector<32x128xf32>
    %68 = arith.addf %65, %67 : vector<32x128xf32>
    %69 = vector.extract_strided_slice %68 {offsets = [0, 0], sizes = [32, 96], strides = [1, 1]} : vector<32x128xf32> to vector<32x96xf32>
    %70 = arith.negf %69 : vector<32x96xf32>
    %71 = math.exp %70 : vector<32x96xf32>
    %cst_27 = arith.constant 1.000000e+00 : f32
    %72 = vector.broadcast %cst_27 : f32 to vector<32x96xf32>
    %73 = arith.addf %72, %71 : vector<32x96xf32>
    %74 = arith.divf %72, %73 : vector<32x96xf32>
    %75 = vector.extract_strided_slice %68 {offsets = [0, 96], sizes = [32, 32], strides = [1, 1]} : vector<32x128xf32> to vector<32x32xf32>
    %76 = math.tanh %75 : vector<32x32xf32>
    %77 = vector.extract_strided_slice %74 {offsets = [0, 0], sizes = [32, 32], strides = [1, 1]} : vector<32x96xf32> to vector<32x32xf32>
    %78 = vector.extract_strided_slice %74 {offsets = [0, 32], sizes = [32, 32], strides = [1, 1]} : vector<32x96xf32> to vector<32x32xf32>
    %79 = vector.extract_strided_slice %74 {offsets = [0, 64], sizes = [32, 32], strides = [1, 1]} : vector<32x96xf32> to vector<32x32xf32>
    %80 = arith.mulf %78, %56 : vector<32x32xf32>
    %81 = arith.mulf %77, %76 : vector<32x32xf32>
    %82 = arith.addf %80, %81 : vector<32x32xf32>
    %83 = math.tanh %82 : vector<32x32xf32>
    %84 = arith.mulf %79, %83 : vector<32x32xf32>
    %85 = arith.index_cast %c2_i32 : i32 to index
    %c0_28 = arith.constant 0 : index
    %c0_29 = arith.constant 0 : index
    %86 = vector.load %arg7[%85, %c0_28, %c0_29] : memref<8x32x32xf32, #tpu.memory_space<vmem>>, vector<1x32x32xf32>
    %87 = vector.shape_cast %86 : vector<1x32x32xf32> to vector<32x32xf32>
    %88 = vector.shape_cast %84 : vector<32x32xf32> to vector<1x32x32xf32>
    tpu.vector_store %arg7[%85, %c0_28, %c0_29], %88 {strides = array<i32>} : memref<8x32x32xf32, #tpu.memory_space<vmem>>, vector<1x32x32xf32>,
    %c3_i32 = arith.constant 3 : i32
    %89 = arith.index_cast %c3_i32 : i32 to index
    %c0_30 = arith.constant 0 : index
    %c0_31 = arith.constant 0 : index
    %90 = vector.load %arg6[%89, %c0_30, %c0_31] : memref<8x32x128xf32, #tpu.memory_space<vmem>>, vector<1x32x128xf32>
    %91 = vector.shape_cast %90 : vector<1x32x128xf32> to vector<32x128xf32>
    %92 = arith.truncf %84 : vector<32x32xf32> to vector<32x32xbf16>
    %cst_32 = arith.constant dense<0.000000e+00> : vector<32x128xf32>
    %93 = tpu.matmul %92, %1, %cst_32 {dimension_numbers = #tpu.dot_dimension_numbers<[1], [0], [0], [1], [0, 0, 1, 1], [], []>} : vector<32x32xbf16>, vector<32x128xbf16>, vector<32x128xf32> -> vector<32x128xf32>
    %94 = arith.addf %91, %93 : vector<32x128xf32>
    %95 = vector.extract_strided_slice %94 {offsets = [0, 0], sizes = [32, 96], strides = [1, 1]} : vector<32x128xf32> to vector<32x96xf32>
    %96 = arith.negf %95 : vector<32x96xf32>
    %97 = math.exp %96 : vector<32x96xf32>
    %cst_33 = arith.constant 1.000000e+00 : f32
    %98 = vector.broadcast %cst_33 : f32 to vector<32x96xf32>
    %99 = arith.addf %98, %97 : vector<32x96xf32>
    %100 = arith.divf %98, %99 : vector<32x96xf32>
    %101 = vector.extract_strided_slice %94 {offsets = [0, 96], sizes = [32, 32], strides = [1, 1]} : vector<32x128xf32> to vector<32x32xf32>
    %102 = math.tanh %101 : vector<32x32xf32>
    %103 = vector.extract_strided_slice %100 {offsets = [0, 0], sizes = [32, 32], strides = [1, 1]} : vector<32x96xf32> to vector<32x32xf32>
    %104 = vector.extract_strided_slice %100 {offsets = [0, 32], sizes = [32, 32], strides = [1, 1]} : vector<32x96xf32> to vector<32x32xf32>
    %105 = vector.extract_strided_slice %100 {offsets = [0, 64], sizes = [32, 32], strides = [1, 1]} : vector<32x96xf32> to vector<32x32xf32>
    %106 = arith.mulf %104, %82 : vector<32x32xf32>
    %107 = arith.mulf %103, %102 : vector<32x32xf32>
    %108 = arith.addf %106, %107 : vector<32x32xf32>
    %109 = math.tanh %108 : vector<32x32xf32>
    %110 = arith.mulf %105, %109 : vector<32x32xf32>
    %111 = arith.index_cast %c3_i32 : i32 to index
    %c0_34 = arith.constant 0 : index
    %c0_35 = arith.constant 0 : index
    %112 = vector.load %arg7[%111, %c0_34, %c0_35] : memref<8x32x32xf32, #tpu.memory_space<vmem>>, vector<1x32x32xf32>
    %113 = vector.shape_cast %112 : vector<1x32x32xf32> to vector<32x32xf32>
    %114 = vector.shape_cast %110 : vector<32x32xf32> to vector<1x32x32xf32>
    tpu.vector_store %arg7[%111, %c0_34, %c0_35], %114 {strides = array<i32>} : memref<8x32x32xf32, #tpu.memory_space<vmem>>, vector<1x32x32xf32>,
    %c4_i32 = arith.constant 4 : i32
    %115 = arith.index_cast %c4_i32 : i32 to index
    %c0_36 = arith.constant 0 : index
    %c0_37 = arith.constant 0 : index
    %116 = vector.load %arg6[%115, %c0_36, %c0_37] : memref<8x32x128xf32, #tpu.memory_space<vmem>>, vector<1x32x128xf32>
    %117 = vector.shape_cast %116 : vector<1x32x128xf32> to vector<32x128xf32>
    %118 = arith.truncf %110 : vector<32x32xf32> to vector<32x32xbf16>
    %cst_38 = arith.constant dense<0.000000e+00> : vector<32x128xf32>
    %119 = tpu.matmul %118, %1, %cst_38 {dimension_numbers = #tpu.dot_dimension_numbers<[1], [0], [0], [1], [0, 0, 1, 1], [], []>} : vector<32x32xbf16>, vector<32x128xbf16>, vector<32x128xf32> -> vector<32x128xf32>
    %120 = arith.addf %117, %119 : vector<32x128xf32>
    %121 = vector.extract_strided_slice %120 {offsets = [0, 0], sizes = [32, 96], strides = [1, 1]} : vector<32x128xf32> to vector<32x96xf32>
    %122 = arith.negf %121 : vector<32x96xf32>
    %123 = math.exp %122 : vector<32x96xf32>
    %cst_39 = arith.constant 1.000000e+00 : f32
    %124 = vector.broadcast %cst_39 : f32 to vector<32x96xf32>
    %125 = arith.addf %124, %123 : vector<32x96xf32>
    %126 = arith.divf %124, %125 : vector<32x96xf32>
    %127 = vector.extract_strided_slice %120 {offsets = [0, 96], sizes = [32, 32], strides = [1, 1]} : vector<32x128xf32> to vector<32x32xf32>
    %128 = math.tanh %127 : vector<32x32xf32>
    %129 = vector.extract_strided_slice %126 {offsets = [0, 0], sizes = [32, 32], strides = [1, 1]} : vector<32x96xf32> to vector<32x32xf32>
    %130 = vector.extract_strided_slice %126 {offsets = [0, 32], sizes = [32, 32], strides = [1, 1]} : vector<32x96xf32> to vector<32x32xf32>
    %131 = vector.extract_strided_slice %126 {offsets = [0, 64], sizes = [32, 32], strides = [1, 1]} : vector<32x96xf32> to vector<32x32xf32>
    %132 = arith.mulf %130, %108 : vector<32x32xf32>
    %133 = arith.mulf %129, %128 : vector<32x32xf32>
    %134 = arith.addf %132, %133 : vector<32x32xf32>
    %135 = math.tanh %134 : vector<32x32xf32>
    %136 = arith.mulf %131, %135 : vector<32x32xf32>
    %137 = arith.index_cast %c4_i32 : i32 to index
    %c0_40 = arith.constant 0 : index
    %c0_41 = arith.constant 0 : index
    %138 = vector.load %arg7[%137, %c0_40, %c0_41] : memref<8x32x32xf32, #tpu.memory_space<vmem>>, vector<1x32x32xf32>
    %139 = vector.shape_cast %138 : vector<1x32x32xf32> to vector<32x32xf32>
    %140 = vector.shape_cast %136 : vector<32x32xf32> to vector<1x32x32xf32>
    tpu.vector_store %arg7[%137, %c0_40, %c0_41], %140 {strides = array<i32>} : memref<8x32x32xf32, #tpu.memory_space<vmem>>, vector<1x32x32xf32>,
    %c5_i32 = arith.constant 5 : i32
    %141 = arith.index_cast %c5_i32 : i32 to index
    %c0_42 = arith.constant 0 : index
    %c0_43 = arith.constant 0 : index
    %142 = vector.load %arg6[%141, %c0_42, %c0_43] : memref<8x32x128xf32, #tpu.memory_space<vmem>>, vector<1x32x128xf32>
    %143 = vector.shape_cast %142 : vector<1x32x128xf32> to vector<32x128xf32>
    %144 = arith.truncf %136 : vector<32x32xf32> to vector<32x32xbf16>
    %cst_44 = arith.constant dense<0.000000e+00> : vector<32x128xf32>
    %145 = tpu.matmul %144, %1, %cst_44 {dimension_numbers = #tpu.dot_dimension_numbers<[1], [0], [0], [1], [0, 0, 1, 1], [], []>} : vector<32x32xbf16>, vector<32x128xbf16>, vector<32x128xf32> -> vector<32x128xf32>
    %146 = arith.addf %143, %145 : vector<32x128xf32>
    %147 = vector.extract_strided_slice %146 {offsets = [0, 0], sizes = [32, 96], strides = [1, 1]} : vector<32x128xf32> to vector<32x96xf32>
    %148 = arith.negf %147 : vector<32x96xf32>
    %149 = math.exp %148 : vector<32x96xf32>
    %cst_45 = arith.constant 1.000000e+00 : f32
    %150 = vector.broadcast %cst_45 : f32 to vector<32x96xf32>
    %151 = arith.addf %150, %149 : vector<32x96xf32>
    %152 = arith.divf %150, %151 : vector<32x96xf32>
    %153 = vector.extract_strided_slice %146 {offsets = [0, 96], sizes = [32, 32], strides = [1, 1]} : vector<32x128xf32> to vector<32x32xf32>
    %154 = math.tanh %153 : vector<32x32xf32>
    %155 = vector.extract_strided_slice %152 {offsets = [0, 0], sizes = [32, 32], strides = [1, 1]} : vector<32x96xf32> to vector<32x32xf32>
    %156 = vector.extract_strided_slice %152 {offsets = [0, 32], sizes = [32, 32], strides = [1, 1]} : vector<32x96xf32> to vector<32x32xf32>
    %157 = vector.extract_strided_slice %152 {offsets = [0, 64], sizes = [32, 32], strides = [1, 1]} : vector<32x96xf32> to vector<32x32xf32>
    %158 = arith.mulf %156, %134 : vector<32x32xf32>
    %159 = arith.mulf %155, %154 : vector<32x32xf32>
    %160 = arith.addf %158, %159 : vector<32x32xf32>
    %161 = math.tanh %160 : vector<32x32xf32>
    %162 = arith.mulf %157, %161 : vector<32x32xf32>
    %163 = arith.index_cast %c5_i32 : i32 to index
    %c0_46 = arith.constant 0 : index
    %c0_47 = arith.constant 0 : index
    %164 = vector.load %arg7[%163, %c0_46, %c0_47] : memref<8x32x32xf32, #tpu.memory_space<vmem>>, vector<1x32x32xf32>
    %165 = vector.shape_cast %164 : vector<1x32x32xf32> to vector<32x32xf32>
    %166 = vector.shape_cast %162 : vector<32x32xf32> to vector<1x32x32xf32>
    tpu.vector_store %arg7[%163, %c0_46, %c0_47], %166 {strides = array<i32>} : memref<8x32x32xf32, #tpu.memory_space<vmem>>, vector<1x32x32xf32>,
    %c6_i32 = arith.constant 6 : i32
    %167 = arith.index_cast %c6_i32 : i32 to index
    %c0_48 = arith.constant 0 : index
    %c0_49 = arith.constant 0 : index
    %168 = vector.load %arg6[%167, %c0_48, %c0_49] : memref<8x32x128xf32, #tpu.memory_space<vmem>>, vector<1x32x128xf32>
    %169 = vector.shape_cast %168 : vector<1x32x128xf32> to vector<32x128xf32>
    %170 = arith.truncf %162 : vector<32x32xf32> to vector<32x32xbf16>
    %cst_50 = arith.constant dense<0.000000e+00> : vector<32x128xf32>
    %171 = tpu.matmul %170, %1, %cst_50 {dimension_numbers = #tpu.dot_dimension_numbers<[1], [0], [0], [1], [0, 0, 1, 1], [], []>} : vector<32x32xbf16>, vector<32x128xbf16>, vector<32x128xf32> -> vector<32x128xf32>
    %172 = arith.addf %169, %171 : vector<32x128xf32>
    %173 = vector.extract_strided_slice %172 {offsets = [0, 0], sizes = [32, 96], strides = [1, 1]} : vector<32x128xf32> to vector<32x96xf32>
    %174 = arith.negf %173 : vector<32x96xf32>
    %175 = math.exp %174 : vector<32x96xf32>
    %cst_51 = arith.constant 1.000000e+00 : f32
    %176 = vector.broadcast %cst_51 : f32 to vector<32x96xf32>
    %177 = arith.addf %176, %175 : vector<32x96xf32>
    %178 = arith.divf %176, %177 : vector<32x96xf32>
    %179 = vector.extract_strided_slice %172 {offsets = [0, 96], sizes = [32, 32], strides = [1, 1]} : vector<32x128xf32> to vector<32x32xf32>
    %180 = math.tanh %179 : vector<32x32xf32>
    %181 = vector.extract_strided_slice %178 {offsets = [0, 0], sizes = [32, 32], strides = [1, 1]} : vector<32x96xf32> to vector<32x32xf32>
    %182 = vector.extract_strided_slice %178 {offsets = [0, 32], sizes = [32, 32], strides = [1, 1]} : vector<32x96xf32> to vector<32x32xf32>
    %183 = vector.extract_strided_slice %178 {offsets = [0, 64], sizes = [32, 32], strides = [1, 1]} : vector<32x96xf32> to vector<32x32xf32>
    %184 = arith.mulf %182, %160 : vector<32x32xf32>
    %185 = arith.mulf %181, %180 : vector<32x32xf32>
    %186 = arith.addf %184, %185 : vector<32x32xf32>
    %187 = math.tanh %186 : vector<32x32xf32>
    %188 = arith.mulf %183, %187 : vector<32x32xf32>
    %189 = arith.index_cast %c6_i32 : i32 to index
    %c0_52 = arith.constant 0 : index
    %c0_53 = arith.constant 0 : index
    %190 = vector.load %arg7[%189, %c0_52, %c0_53] : memref<8x32x32xf32, #tpu.memory_space<vmem>>, vector<1x32x32xf32>
    %191 = vector.shape_cast %190 : vector<1x32x32xf32> to vector<32x32xf32>
    %192 = vector.shape_cast %188 : vector<32x32xf32> to vector<1x32x32xf32>
    tpu.vector_store %arg7[%189, %c0_52, %c0_53], %192 {strides = array<i32>} : memref<8x32x32xf32, #tpu.memory_space<vmem>>, vector<1x32x32xf32>,
    %c7_i32 = arith.constant 7 : i32
    %193 = arith.index_cast %c7_i32 : i32 to index
    %c0_54 = arith.constant 0 : index
    %c0_55 = arith.constant 0 : index
    %194 = vector.load %arg6[%193, %c0_54, %c0_55] : memref<8x32x128xf32, #tpu.memory_space<vmem>>, vector<1x32x128xf32>
    %195 = vector.shape_cast %194 : vector<1x32x128xf32> to vector<32x128xf32>
    %196 = arith.truncf %188 : vector<32x32xf32> to vector<32x32xbf16>
    %cst_56 = arith.constant dense<0.000000e+00> : vector<32x128xf32>
    %197 = tpu.matmul %196, %1, %cst_56 {dimension_numbers = #tpu.dot_dimension_numbers<[1], [0], [0], [1], [0, 0, 1, 1], [], []>} : vector<32x32xbf16>, vector<32x128xbf16>, vector<32x128xf32> -> vector<32x128xf32>
    %198 = arith.addf %195, %197 : vector<32x128xf32>
    %199 = vector.extract_strided_slice %198 {offsets = [0, 0], sizes = [32, 96], strides = [1, 1]} : vector<32x128xf32> to vector<32x96xf32>
    %200 = arith.negf %199 : vector<32x96xf32>
    %201 = math.exp %200 : vector<32x96xf32>
    %cst_57 = arith.constant 1.000000e+00 : f32
    %202 = vector.broadcast %cst_57 : f32 to vector<32x96xf32>
    %203 = arith.addf %202, %201 : vector<32x96xf32>
    %204 = arith.divf %202, %203 : vector<32x96xf32>
    %205 = vector.extract_strided_slice %198 {offsets = [0, 96], sizes = [32, 32], strides = [1, 1]} : vector<32x128xf32> to vector<32x32xf32>
    %206 = math.tanh %205 : vector<32x32xf32>
    %207 = vector.extract_strided_slice %204 {offsets = [0, 0], sizes = [32, 32], strides = [1, 1]} : vector<32x96xf32> to vector<32x32xf32>
    %208 = vector.extract_strided_slice %204 {offsets = [0, 32], sizes = [32, 32], strides = [1, 1]} : vector<32x96xf32> to vector<32x32xf32>
    %209 = vector.extract_strided_slice %204 {offsets = [0, 64], sizes = [32, 32], strides = [1, 1]} : vector<32x96xf32> to vector<32x32xf32>
    %210 = arith.mulf %208, %186 : vector<32x32xf32>
    %211 = arith.mulf %207, %206 : vector<32x32xf32>
    %212 = arith.addf %210, %211 : vector<32x32xf32>
    %213 = math.tanh %212 : vector<32x32xf32>
    %214 = arith.mulf %209, %213 : vector<32x32xf32>
    %215 = arith.index_cast %c7_i32 : i32 to index
    %c0_58 = arith.constant 0 : index
    %c0_59 = arith.constant 0 : index
    %216 = vector.load %arg7[%215, %c0_58, %c0_59] : memref<8x32x32xf32, #tpu.memory_space<vmem>>, vector<1x32x32xf32>
    %217 = vector.shape_cast %216 : vector<1x32x32xf32> to vector<32x32xf32>
    %218 = vector.shape_cast %214 : vector<32x32xf32> to vector<1x32x32xf32>
    tpu.vector_store %arg7[%215, %c0_58, %c0_59], %218 {strides = array<i32>} : memref<8x32x32xf32, #tpu.memory_space<vmem>>, vector<1x32x32xf32>,
    %c8_i32 = arith.constant 8 : i32
    %c0_60 = arith.constant 0 : index
    %c0_61 = arith.constant 0 : index
    %c0_62 = arith.constant 0 : index
    %219 = vector.load %arg7[%c0_60, %c0_61, %c0_62] : memref<8x32x32xf32, #tpu.memory_space<vmem>>, vector<8x32x16xf32>
    %c0_63 = arith.constant 0 : index
    %c0_64 = arith.constant 0 : index
    %c0_65 = arith.constant 0 : index
    %220 = vector.load %arg5[%c0_63, %c0_64, %c0_65] : memref<8x32x32xf32, #tpu.memory_space<vmem>>, vector<8x32x16xf32>
    tpu.vector_store %arg5[%c0_63, %c0_64, %c0_65], %219 {strides = array<i32>} : memref<8x32x32xf32, #tpu.memory_space<vmem>>, vector<8x32x16xf32>,
    %c7 = arith.constant 7 : index
    %c0_66 = arith.constant 0 : index
    %c16 = arith.constant 16 : index
    %221 = vector.load %arg7[%c7, %c0_66, %c16] : memref<8x32x32xf32, #tpu.memory_space<vmem>>, vector<1x32x16xf32>
    %222 = vector.shape_cast %221 : vector<1x32x16xf32> to vector<32x16xf32>
    %c0_67 = arith.constant 0 : index
    %c0_68 = arith.constant 0 : index
    %c16_69 = arith.constant 16 : index
    %223 = vector.load %arg5[%c0_67, %c0_68, %c16_69] : memref<8x32x32xf32, #tpu.memory_space<vmem>>, vector<1x32x16xf32>
    %224 = vector.shape_cast %223 : vector<1x32x16xf32> to vector<32x16xf32>
    %225 = vector.shape_cast %222 : vector<32x16xf32> to vector<1x32x16xf32>
    tpu.vector_store %arg5[%c0_67, %c0_68, %c16_69], %225 {strides = array<i32>} : memref<8x32x32xf32, #tpu.memory_space<vmem>>, vector<1x32x16xf32>,
    %c6 = arith.constant 6 : index
    %c0_70 = arith.constant 0 : index
    %c16_71 = arith.constant 16 : index
    %226 = vector.load %arg7[%c6, %c0_70, %c16_71] : memref<8x32x32xf32, #tpu.memory_space<vmem>>, vector<1x32x16xf32>
    %227 = vector.shape_cast %226 : vector<1x32x16xf32> to vector<32x16xf32>
    %c1 = arith.constant 1 : index
    %c0_72 = arith.constant 0 : index
    %c16_73 = arith.constant 16 : index
    %228 = vector.load %arg5[%c1, %c0_72, %c16_73] : memref<8x32x32xf32, #tpu.memory_space<vmem>>, vector<1x32x16xf32>
    %229 = vector.shape_cast %228 : vector<1x32x16xf32> to vector<32x16xf32>
    %230 = vector.shape_cast %227 : vector<32x16xf32> to vector<1x32x16xf32>
    tpu.vector_store %arg5[%c1, %c0_72, %c16_73], %230 {strides = array<i32>} : memref<8x32x32xf32, #tpu.memory_space<vmem>>, vector<1x32x16xf32>,
    %c5 = arith.constant 5 : index
    %c0_74 = arith.constant 0 : index
    %c16_75 = arith.constant 16 : index
    %231 = vector.load %arg7[%c5, %c0_74, %c16_75] : memref<8x32x32xf32, #tpu.memory_space<vmem>>, vector<1x32x16xf32>
    %232 = vector.shape_cast %231 : vector<1x32x16xf32> to vector<32x16xf32>
    %c2 = arith.constant 2 : index
    %c0_76 = arith.constant 0 : index
    %c16_77 = arith.constant 16 : index
    %233 = vector.load %arg5[%c2, %c0_76, %c16_77] : memref<8x32x32xf32, #tpu.memory_space<vmem>>, vector<1x32x16xf32>
    %234 = vector.shape_cast %233 : vector<1x32x16xf32> to vector<32x16xf32>
    %235 = vector.shape_cast %232 : vector<32x16xf32> to vector<1x32x16xf32>
    tpu.vector_store %arg5[%c2, %c0_76, %c16_77], %235 {strides = array<i32>} : memref<8x32x32xf32, #tpu.memory_space<vmem>>, vector<1x32x16xf32>,
    %c4 = arith.constant 4 : index
    %c0_78 = arith.constant 0 : index
    %c16_79 = arith.constant 16 : index
    %236 = vector.load %arg7[%c4, %c0_78, %c16_79] : memref<8x32x32xf32, #tpu.memory_space<vmem>>, vector<1x32x16xf32>
    %237 = vector.shape_cast %236 : vector<1x32x16xf32> to vector<32x16xf32>
    %c3 = arith.constant 3 : index
    %c0_80 = arith.constant 0 : index
    %c16_81 = arith.constant 16 : index
    %238 = vector.load %arg5[%c3, %c0_80, %c16_81] : memref<8x32x32xf32, #tpu.memory_space<vmem>>, vector<1x32x16xf32>
    %239 = vector.shape_cast %238 : vector<1x32x16xf32> to vector<32x16xf32>
    %240 = vector.shape_cast %237 : vector<32x16xf32> to vector<1x32x16xf32>
    tpu.vector_store %arg5[%c3, %c0_80, %c16_81], %240 {strides = array<i32>} : memref<8x32x32xf32, #tpu.memory_space<vmem>>, vector<1x32x16xf32>,
    %c3_82 = arith.constant 3 : index
    %c0_83 = arith.constant 0 : index
    %c16_84 = arith.constant 16 : index
    %241 = vector.load %arg7[%c3_82, %c0_83, %c16_84] : memref<8x32x32xf32, #tpu.memory_space<vmem>>, vector<1x32x16xf32>
    %242 = vector.shape_cast %241 : vector<1x32x16xf32> to vector<32x16xf32>
    %c4_85 = arith.constant 4 : index
    %c0_86 = arith.constant 0 : index
    %c16_87 = arith.constant 16 : index
    %243 = vector.load %arg5[%c4_85, %c0_86, %c16_87] : memref<8x32x32xf32, #tpu.memory_space<vmem>>, vector<1x32x16xf32>
    %244 = vector.shape_cast %243 : vector<1x32x16xf32> to vector<32x16xf32>
    %245 = vector.shape_cast %242 : vector<32x16xf32> to vector<1x32x16xf32>
    tpu.vector_store %arg5[%c4_85, %c0_86, %c16_87], %245 {strides = array<i32>} : memref<8x32x32xf32, #tpu.memory_space<vmem>>, vector<1x32x16xf32>,
    %c2_88 = arith.constant 2 : index
    %c0_89 = arith.constant 0 : index
    %c16_90 = arith.constant 16 : index
    %246 = vector.load %arg7[%c2_88, %c0_89, %c16_90] : memref<8x32x32xf32, #tpu.memory_space<vmem>>, vector<1x32x16xf32>
    %247 = vector.shape_cast %246 : vector<1x32x16xf32> to vector<32x16xf32>
    %c5_91 = arith.constant 5 : index
    %c0_92 = arith.constant 0 : index
    %c16_93 = arith.constant 16 : index
    %248 = vector.load %arg5[%c5_91, %c0_92, %c16_93] : memref<8x32x32xf32, #tpu.memory_space<vmem>>, vector<1x32x16xf32>
    %249 = vector.shape_cast %248 : vector<1x32x16xf32> to vector<32x16xf32>
    %250 = vector.shape_cast %247 : vector<32x16xf32> to vector<1x32x16xf32>
    tpu.vector_store %arg5[%c5_91, %c0_92, %c16_93], %250 {strides = array<i32>} : memref<8x32x32xf32, #tpu.memory_space<vmem>>, vector<1x32x16xf32>,
    %c1_94 = arith.constant 1 : index
    %c0_95 = arith.constant 0 : index
    %c16_96 = arith.constant 16 : index
    %251 = vector.load %arg7[%c1_94, %c0_95, %c16_96] : memref<8x32x32xf32, #tpu.memory_space<vmem>>, vector<1x32x16xf32>
    %252 = vector.shape_cast %251 : vector<1x32x16xf32> to vector<32x16xf32>
    %c6_97 = arith.constant 6 : index
    %c0_98 = arith.constant 0 : index
    %c16_99 = arith.constant 16 : index
    %253 = vector.load %arg5[%c6_97, %c0_98, %c16_99] : memref<8x32x32xf32, #tpu.memory_space<vmem>>, vector<1x32x16xf32>
    %254 = vector.shape_cast %253 : vector<1x32x16xf32> to vector<32x16xf32>
    %255 = vector.shape_cast %252 : vector<32x16xf32> to vector<1x32x16xf32>
    tpu.vector_store %arg5[%c6_97, %c0_98, %c16_99], %255 {strides = array<i32>} : memref<8x32x32xf32, #tpu.memory_space<vmem>>, vector<1x32x16xf32>,
    %c0_100 = arith.constant 0 : index
    %c0_101 = arith.constant 0 : index
    %c16_102 = arith.constant 16 : index
    %256 = vector.load %arg7[%c0_100, %c0_101, %c16_102] : memref<8x32x32xf32, #tpu.memory_space<vmem>>, vector<1x32x16xf32>
    %257 = vector.shape_cast %256 : vector<1x32x16xf32> to vector<32x16xf32>
    %c7_103 = arith.constant 7 : index
    %c0_104 = arith.constant 0 : index
    %c16_105 = arith.constant 16 : index
    %258 = vector.load %arg5[%c7_103, %c0_104, %c16_105] : memref<8x32x32xf32, #tpu.memory_space<vmem>>, vector<1x32x16xf32>
    %259 = vector.shape_cast %258 : vector<1x32x16xf32> to vector<32x16xf32>
    %260 = vector.shape_cast %257 : vector<32x16xf32> to vector<1x32x16xf32>
    tpu.vector_store %arg5[%c7_103, %c0_104, %c16_105], %260 {strides = array<i32>} : memref<8x32x32xf32, #tpu.memory_space<vmem>>, vector<1x32x16xf32>,
    return
  }
  func.func @transform_0(%arg0: i32) -> (i32, i32, i32) {
    %c0_i32 = arith.constant 0 : i32
    %c0_i32_0 = arith.constant 0 : i32
    %c0_i32_1 = arith.constant 0 : i32
    return %c0_i32, %arg0, %c0_i32_0 : i32, i32, i32
  }
  func.func @transform_1(%arg0: i32) -> (i32, i32) {
    %c0_i32 = arith.constant 0 : i32
    %c0_i32_0 = arith.constant 0 : i32
    %c0_i32_1 = arith.constant 0 : i32
    return %c0_i32, %c0_i32_0 : i32, i32
  }
  func.func @transform_2(%arg0: i32) -> (i32, i32) {
    %c0_i32 = arith.constant 0 : i32
    %c0_i32_0 = arith.constant 0 : i32
    %c0_i32_1 = arith.constant 0 : i32
    return %c0_i32, %c0_i32_0 : i32, i32
  }
  func.func @transform_3(%arg0: i32) -> (i32, i32) {
    %c0_i32 = arith.constant 0 : i32
    %c0_i32_0 = arith.constant 0 : i32
    %c0_i32_1 = arith.constant 0 : i32
    return %c0_i32, %c0_i32_0 : i32, i32
  }
  func.func @transform_4(%arg0: i32) -> (i32, i32, i32) {
    %c0_i32 = arith.constant 0 : i32
    %c0_i32_0 = arith.constant 0 : i32
    %c0_i32_1 = arith.constant 0 : i32
    return %c0_i32, %arg0, %c0_i32_0 : i32, i32, i32
  }
}

</mosaic_0001>

<llo_original>
// kernel: rnn_forward.1
$region0: #{rnn_forward.1}
  #allocation0 [shape = 'u32[]', space=smem, size = 0x4, offset = 0x4, fixed_abs, tag = 'smem constant byte address 0x4 - core index']
  #allocation1 [shape = 'u32[144,128]{1,0:T(1,128)}', space=vmem, size = 0x12000, scoped, tag = 'internal scratch']
  #allocation2 [shape = 'f32[8,32,128]{2,1,0:T(8,128)}', space=vmem, size = 0x20000, scoped, tag = 'scratch operand']
  #allocation3 [shape = 'f32[8,32,32]{2,1,0:T(8,128)}', space=vmem, size = 0x20000, scoped, tag = 'scratch operand']
  %s0 = inlined_call_operand.vmem [shape: bf16[8,32,8], index: 0, kind: input, shape index: {}]
  %s1 = inlined_call_operand.vmem [shape: bf16[8,128], index: 1, kind: input, shape index: {}]
  %s2 = inlined_call_operand.vmem [shape: bf16[32,128], index: 2, kind: input, shape index: {}]
  %s3 = inlined_call_operand.vmem [shape: f32[1,128], index: 3, kind: input, shape index: {}]
  %s4 = inlined_call_operand.vmem [shape: f32[8,32,32], index: 4, kind: output, shape index: {}]
  %s5 = sld [smem:[#allocation0]]
  $region26: #{rnn_forward.1} parent=0
    _
  %s7 = ssub.s32 1, %s5
  %s8 = scalar_select 0, %s7, %s5
  // Predicated region
  $region2: #{rnn_forward.1} parent=0 // pred_check
    _
  $region3: #{rnn_forward.1} parent=0 // pred_check_branch
    %10 = sbr.rel (0) target = $region5
  $region4: #{rnn_forward.1} parent=0 // pred_region
    _
  $region5: #{rnn_forward.1} parent=0 // pred_fallthru
    _
  // Predicated region
  $region6: #{rnn_forward.1} parent=0 // pred_check
    _
  $region7: #{rnn_forward.1} parent=0 // pred_check_branch
    %12 = sbr.rel (0) target = $region9
  $region8: #{rnn_forward.1} parent=0 // pred_region
    _
  $region9: #{rnn_forward.1} parent=0 // pred_fallthru
    _
  // Predicated region
  $region10: #{rnn_forward.1} parent=0 // pred_check
    _
  $region11: #{rnn_forward.1} parent=0 // pred_check_branch
    %14 = sbr.rel (0) target = $region13
  $region12: #{rnn_forward.1} parent=0 // pred_region
    _
  $region13: #{rnn_forward.1} parent=0 // pred_fallthru
    _
  // Predicated region
  $region14: #{rnn_forward.1} parent=0 // pred_check
    _
  $region15: #{rnn_forward.1} parent=0 // pred_check_branch
    %16 = sbr.rel (0) target = $region17
  $region16: #{rnn_forward.1} parent=0 // pred_region
    _
  $region17: #{rnn_forward.1} parent=0 // pred_fallthru
    _
  %v18 = vld [vmem:[%s1] sm:$0xf]
  %v19 = vld [vmem:[%s2] sm:$0xf]
  %v20 = vld [vmem:[%s2 + $0x4] sm:$0xf]
  %v21 = vld [vmem:[%s2 + $0x8] sm:$0xf]
  %v22 = vld [vmem:[%s2 + $0xc] sm:$0xf]
  %v23 = vld [vmem:[%s3] sm:$0x1]
  %v24 = vld [vmem:[%s0] sm:$0xf]
  %v25 = vld [vmem:[%s0 + $0x4] sm:$0xf]
  %v26 = vld [vmem:[%s0 + $0x8] sm:$0xf]
  %v27 = vld [vmem:[%s0 + $0xc] sm:$0xf]
  %v28 = vld [vmem:[%s0 + $0x10] sm:$0xf]
  %v29 = vld [vmem:[%s0 + $0x14] sm:$0xf]
  %v30 = vld [vmem:[%s0 + $0x18] sm:$0xf]
  %v31 = vld [vmem:[%s0 + $0x1c] sm:$0xf]
  %v32 = vld [vmem:[%s0 + $0x20] sm:$0xf]
  %v33 = vld [vmem:[%s0 + $0x24] sm:$0xf]
  %v34 = vld [vmem:[%s0 + $0x28] sm:$0xf]
  %v35 = vld [vmem:[%s0 + $0x2c] sm:$0xf]
  %v36 = vld [vmem:[%s0 + $0x30] sm:$0xf]
  %v37 = vld [vmem:[%s0 + $0x34] sm:$0xf]
  %v38 = vld [vmem:[%s0 + $0x38] sm:$0xf]
  %v39 = vld [vmem:[%s0 + $0x3c] sm:$0xf]
  %v40 = vld [vmem:[%s0 + $0x40] sm:$0xf]
  %v41 = vld [vmem:[%s0 + $0x44] sm:$0xf]
  %v42 = vld [vmem:[%s0 + $0x48] sm:$0xf]
  %v43 = vld [vmem:[%s0 + $0x4c] sm:$0xf]
  %v44 = vld [vmem:[%s0 + $0x50] sm:$0xf]
  %v45 = vld [vmem:[%s0 + $0x54] sm:$0xf]
  %v46 = vld [vmem:[%s0 + $0x58] sm:$0xf]
  %v47 = vld [vmem:[%s0 + $0x5c] sm:$0xf]
  %v48 = vld [vmem:[%s0 + $0x60] sm:$0xf]
  %v49 = vld [vmem:[%s0 + $0x64] sm:$0xf]
  %v50 = vld [vmem:[%s0 + $0x68] sm:$0xf]
  %v51 = vld [vmem:[%s0 + $0x6c] sm:$0xf]
  %v52 = vld [vmem:[%s0 + $0x70] sm:$0xf]
  %v53 = vld [vmem:[%s0 + $0x74] sm:$0xf]
  %v54 = vld [vmem:[%s0 + $0x78] sm:$0xf]
  %v55 = vld [vmem:[%s0 + $0x7c] sm:$0xf]
  %v57 = vlaneseq
  %v58 = vshrl.u32 %v57, 7
  %v59 = vsub.s32 0, %v58
  %v60 = vrot.slane %v23, %v59
  %v94 = vunpack.c.l.b16 %v24
  %v95 = vunpack.c.l.b16 %v25
  %v96 = vunpack.c.l.b16 %v26
  %v97 = vunpack.c.l.b16 %v27
  %v98 = vunpack.c.l.b16 %v28
  %v99 = vunpack.c.l.b16 %v29
  %v100 = vunpack.c.l.b16 %v30
  %v101 = vunpack.c.l.b16 %v31
  %v102 = vunpack.c.l.b16 %v32
  %v103 = vunpack.c.l.b16 %v33
  %v104 = vunpack.c.l.b16 %v34
  %v105 = vunpack.c.l.b16 %v35
  %v106 = vunpack.c.l.b16 %v36
  %v107 = vunpack.c.l.b16 %v37
  %v108 = vunpack.c.l.b16 %v38
  %v109 = vunpack.c.l.b16 %v39
  %v110 = vunpack.c.l.b16 %v40
  %v111 = vunpack.c.l.b16 %v41
  %v112 = vunpack.c.l.b16 %v42
  %v113 = vunpack.c.l.b16 %v43
  %v114 = vunpack.c.l.b16 %v44
  %v115 = vunpack.c.l.b16 %v45
  %v116 = vunpack.c.l.b16 %v46
  %v117 = vunpack.c.l.b16 %v47
  %v118 = vunpack.c.l.b16 %v48
  %v119 = vunpack.c.l.b16 %v49
  %v120 = vunpack.c.l.b16 %v50
  %v121 = vunpack.c.l.b16 %v51
  %v122 = vunpack.c.l.b16 %v52
  %v123 = vunpack.c.l.b16 %v53
  %v124 = vunpack.c.l.b16 %v54
  %v125 = vunpack.c.l.b16 %v55
  %v126 = vpack.c.b16 %v95, %v94
  %v127 = vpack.c.b16 %v97, %v96
  %v128 = vpack.c.b16 %v99, %v98
  %v129 = vpack.c.b16 %v101, %v100
  %v130 = vpack.c.b16 %v103, %v102
  %v131 = vpack.c.b16 %v105, %v104
  %v132 = vpack.c.b16 %v107, %v106
  %v133 = vpack.c.b16 %v109, %v108
  %v134 = vpack.c.b16 %v111, %v110
  %v135 = vpack.c.b16 %v113, %v112
  %v136 = vpack.c.b16 %v115, %v114
  %v137 = vpack.c.b16 %v117, %v116
  %v138 = vpack.c.b16 %v119, %v118
  %v139 = vpack.c.b16 %v121, %v120
  %v140 = vpack.c.b16 %v123, %v122
  %v141 = vpack.c.b16 %v125, %v124
  %vm142 = vcmask 64512
  %v144 = vsel %vm142, %v126, 0
  %v147 = vsel %vm142, %v127, 0
  %v150 = vsel %vm142, %v128, 0
  %v153 = vsel %vm142, %v129, 0
  %v156 = vsel %vm142, %v130, 0
  %v159 = vsel %vm142, %v131, 0
  %v162 = vsel %vm142, %v132, 0
  %v165 = vsel %vm142, %v133, 0
  %v168 = vsel %vm142, %v134, 0
  %v171 = vsel %vm142, %v135, 0
  %v174 = vsel %vm142, %v136, 0
  %v177 = vsel %vm142, %v137, 0
  %v180 = vsel %vm142, %v138, 0
  %v183 = vsel %vm142, %v139, 0
  %v186 = vsel %vm142, %v140, 0
  %v189 = vsel %vm142, %v141, 0
  %vm191 = vcmask 1043456
  %v193 = vsel %vm191, %v18, 0
  %195 = vmatprep.subr.bf16.mxu0 0
  %196 = vmatpush1.bf16.msra.mxu0 %v193
  %197 = vmatprep.subr.bf16.mxu0 0
  %198 = vmatpush1.bf16.msra.mxu0 0
  %199 = vmatprep.subr.bf16.mxu0 0
  %200 = vmatpush1.bf16.msra.mxu0 0
  %201 = vmatprep.subr.bf16.mxu0 0
  %202 = vmatpush1.bf16.msra.mxu0 0
  %203 = vmatprep.subr.bf16.mxu0 0
  %204 = vmatpush1.bf16.msra.mxu0 0
  %205 = vmatprep.subr.bf16.mxu0 0
  %206 = vmatpush1.bf16.msra.mxu0 0
  %207 = vmatprep.subr.bf16.mxu0 0
  %208 = vmatpush1.bf16.msra.mxu0 0
  %209 = vmatprep.subr.bf16.mxu0 0
  %210 = vmatpush1.bf16.msra.mxu0 0
  %211 = vmatprep.subr.bf16.mxu0 0
  %212 = vmatpush1.bf16.msra.mxu0 0
  %213 = vmatprep.subr.bf16.mxu0 0
  %214 = vmatpush1.bf16.msra.mxu0 0
  %215 = vmatprep.subr.bf16.mxu0 0
  %216 = vmatpush1.bf16.msra.mxu0 0
  %217 = vmatprep.subr.bf16.mxu0 0
  %218 = vmatpush1.bf16.msra.mxu0 0
  %219 = vmatprep.subr.bf16.mxu0 0
  %220 = vmatpush1.bf16.msra.mxu0 0
  %221 = vmatprep.subr.bf16.mxu0 0
  %222 = vmatpush1.bf16.msra.mxu0 0
  %223 = vmatprep.subr.bf16.mxu0 0
  %224 = vmatpush1.bf16.msra.mxu0 0
  %225 = vmatprep.subr.bf16.mxu0 0
  %226 = vmatpush1.bf16.msra.mxu0 0
  %227 = vmatprep.mubr.bf16.mxu0 0
  %228 = vmatmul.mubr.bf16.gmra.mrb[0].mxu0 %v144
  %v229 = vpop.f32.mrb[0].mxu0
  %v230 = vadd.f32 %v60, %v229
  %v231 = vpop.f32.mrb[0].mxu0
  %v232 = vpop.f32.mrb[0].mxu0
  %v233 = vadd.f32 %v60, %v232
  %v234 = vpop.f32.mrb[0].mxu0
  %235 = vmatprep.mubr.bf16.mxu0 0
  %236 = vmatmul.mubr.bf16.gmra.mrb[0].mxu0 %v147
  %v237 = vpop.f32.mrb[0].mxu0
  %v238 = vadd.f32 %v60, %v237
  %v239 = vpop.f32.mrb[0].mxu0
  %v240 = vpop.f32.mrb[0].mxu0
  %v241 = vadd.f32 %v60, %v240
  %v242 = vpop.f32.mrb[0].mxu0
  %243 = vmatprep.mubr.bf16.mxu0 0
  %244 = vmatmul.mubr.bf16.gmra.mrb[0].mxu0 %v150
  %v245 = vpop.f32.mrb[0].mxu0
  %v246 = vadd.f32 %v60, %v245
  %v247 = vpop.f32.mrb[0].mxu0
  %v248 = vpop.f32.mrb[0].mxu0
  %v249 = vadd.f32 %v60, %v248
  %v250 = vpop.f32.mrb[0].mxu0
  %251 = vmatprep.mubr.bf16.mxu0 0
  %252 = vmatmul.mubr.bf16.gmra.mrb[0].mxu0 %v153
  %v253 = vpop.f32.mrb[0].mxu0
  %v254 = vadd.f32 %v60, %v253
  %v255 = vpop.f32.mrb[0].mxu0
  %v256 = vpop.f32.mrb[0].mxu0
  %v257 = vadd.f32 %v60, %v256
  %v258 = vpop.f32.mrb[0].mxu0
  %259 = vmatprep.mubr.bf16.mxu0 0
  %260 = vmatmul.mubr.bf16.gmra.mrb[0].mxu0 %v156
  %v261 = vpop.f32.mrb[0].mxu0
  %v262 = vadd.f32 %v60, %v261
  %v263 = vpop.f32.mrb[0].mxu0
  %v264 = vpop.f32.mrb[0].mxu0
  %v265 = vadd.f32 %v60, %v264
  %v266 = vpop.f32.mrb[0].mxu0
  %267 = vmatprep.mubr.bf16.mxu0 0
  %268 = vmatmul.mubr.bf16.gmra.mrb[0].mxu0 %v159
  %v269 = vpop.f32.mrb[0].mxu0
  %v270 = vadd.f32 %v60, %v269
  %v271 = vpop.f32.mrb[0].mxu0
  %v272 = vpop.f32.mrb[0].mxu0
  %v273 = vadd.f32 %v60, %v272
  %v274 = vpop.f32.mrb[0].mxu0
  %275 = vmatprep.mubr.bf16.mxu0 0
  %276 = vmatmul.mubr.bf16.gmra.mrb[0].mxu0 %v162
  %v277 = vpop.f32.mrb[0].mxu0
  %v278 = vadd.f32 %v60, %v277
  %v279 = vpop.f32.mrb[0].mxu0
  %v280 = vpop.f32.mrb[0].mxu0
  %v281 = vadd.f32 %v60, %v280
  %v282 = vpop.f32.mrb[0].mxu0
  %283 = vmatprep.mubr.bf16.mxu0 0
  %284 = vmatmul.mubr.bf16.gmra.mrb[0].mxu0 %v165
  %v285 = vpop.f32.mrb[0].mxu0
  %v286 = vadd.f32 %v60, %v285
  %v287 = vpop.f32.mrb[0].mxu0
  %v288 = vpop.f32.mrb[0].mxu0
  %v289 = vadd.f32 %v60, %v288
  %v290 = vpop.f32.mrb[0].mxu0
  %291 = vmatprep.mubr.bf16.mxu0 0
  %292 = vmatmul.mubr.bf16.gmra.mrb[0].mxu0 %v168
  %v293 = vpop.f32.mrb[0].mxu0
  %v294 = vadd.f32 %v60, %v293
  %v295 = vpop.f32.mrb[0].mxu0
  %v296 = vpop.f32.mrb[0].mxu0
  %v297 = vadd.f32 %v60, %v296
  %v298 = vpop.f32.mrb[0].mxu0
  %299 = vmatprep.mubr.bf16.mxu0 0
  %300 = vmatmul.mubr.bf16.gmra.mrb[0].mxu0 %v171
  %v301 = vpop.f32.mrb[0].mxu0
  %v302 = vadd.f32 %v60, %v301
  %v303 = vpop.f32.mrb[0].mxu0
  %v304 = vpop.f32.mrb[0].mxu0
  %v305 = vadd.f32 %v60, %v304
  %v306 = vpop.f32.mrb[0].mxu0
  %307 = vmatprep.mubr.bf16.mxu0 0
  %308 = vmatmul.mubr.bf16.gmra.mrb[0].mxu0 %v174
  %v309 = vpop.f32.mrb[0].mxu0
  %v310 = vadd.f32 %v60, %v309
  %v311 = vpop.f32.mrb[0].mxu0
  %v312 = vpop.f32.mrb[0].mxu0
  %v313 = vadd.f32 %v60, %v312
  %v314 = vpop.f32.mrb[0].mxu0
  %315 = vmatprep.mubr.bf16.mxu0 0
  %316 = vmatmul.mubr.bf16.gmra.mrb[0].mxu0 %v177
  %v317 = vpop.f32.mrb[0].mxu0
  %v318 = vadd.f32 %v60, %v317
  %v319 = vpop.f32.mrb[0].mxu0
  %v320 = vpop.f32.mrb[0].mxu0
  %v321 = vadd.f32 %v60, %v320
  %v322 = vpop.f32.mrb[0].mxu0
  %323 = vmatprep.mubr.bf16.mxu0 0
  %324 = vmatmul.mubr.bf16.gmra.mrb[0].mxu0 %v180
  %v325 = vpop.f32.mrb[0].mxu0
  %v326 = vadd.f32 %v60, %v325
  %v327 = vpop.f32.mrb[0].mxu0
  %v328 = vpop.f32.mrb[0].mxu0
  %v329 = vadd.f32 %v60, %v328
  %v330 = vpop.f32.mrb[0].mxu0
  %331 = vmatprep.mubr.bf16.mxu0 0
  %332 = vmatmul.mubr.bf16.gmra.mrb[0].mxu0 %v183
  %v333 = vpop.f32.mrb[0].mxu0
  %v334 = vadd.f32 %v60, %v333
  %v335 = vpop.f32.mrb[0].mxu0
  %v336 = vpop.f32.mrb[0].mxu0
  %v337 = vadd.f32 %v60, %v336
  %v338 = vpop.f32.mrb[0].mxu0
  %339 = vmatprep.mubr.bf16.mxu0 0
  %340 = vmatmul.mubr.bf16.gmra.mrb[0].mxu0 %v186
  %v341 = vpop.f32.mrb[0].mxu0
  %v342 = vadd.f32 %v60, %v341
  %v343 = vpop.f32.mrb[0].mxu0
  %v344 = vpop.f32.mrb[0].mxu0
  %v345 = vadd.f32 %v60, %v344
  %v346 = vpop.f32.mrb[0].mxu0
  %347 = vmatprep.mubr.bf16.mxu0 0
  %348 = vmatmul.mubr.bf16.gmra.mrb[0].mxu0 %v189
  %v349 = vpop.f32.mrb[0].mxu0
  %v350 = vadd.f32 %v60, %v349
  %v351 = vpop.f32.mrb[0].mxu0
  %v352 = vpop.f32.mrb[0].mxu0
  %v353 = vadd.f32 %v60, %v352
  %v354 = vpop.f32.mrb[0].mxu0
  %355 = vdwg.mxu0
  %356 = vst [vmem:[#allocation2] sm:$0xff] %v230
  %357 = vst [vmem:[#allocation2 + $0x8] sm:$0xff] %v233
  %358 = vst [vmem:[#allocation2 + $0x10] sm:$0xff] %v238
  %359 = vst [vmem:[#allocation2 + $0x18] sm:$0xff] %v241
  %360 = vst [vmem:[#allocation2 + $0x20] sm:$0xff] %v246
  %361 = vst [vmem:[#allocation2 + $0x28] sm:$0xff] %v249
  %362 = vst [vmem:[#allocation2 + $0x30] sm:$0xff] %v254
  %363 = vst [vmem:[#allocation2 + $0x38] sm:$0xff] %v257
  %364 = vst [vmem:[#allocation2 + $0x40] sm:$0xff] %v262
  %365 = vst [vmem:[#allocation2 + $0x48] sm:$0xff] %v265
  %366 = vst [vmem:[#allocation2 + $0x50] sm:$0xff] %v270
  %367 = vst [vmem:[#allocation2 + $0x58] sm:$0xff] %v273
  %368 = vst [vmem:[#allocation2 + $0x60] sm:$0xff] %v278
  %369 = vst [vmem:[#allocation2 + $0x68] sm:$0xff] %v281
  %370 = vst [vmem:[#allocation2 + $0x70] sm:$0xff] %v286
  %371 = vst [vmem:[#allocation2 + $0x78] sm:$0xff] %v289
  %372 = vst [vmem:[#allocation2 + $0x80] sm:$0xff] %v294
  %373 = vst [vmem:[#allocation2 + $0x88] sm:$0xff] %v297
  %374 = vst [vmem:[#allocation2 + $0x90] sm:$0xff] %v302
  %375 = vst [vmem:[#allocation2 + $0x98] sm:$0xff] %v305
  %376 = vst [vmem:[#allocation2 + $0xa0] sm:$0xff] %v310
  %377 = vst [vmem:[#allocation2 + $0xa8] sm:$0xff] %v313
  %378 = vst [vmem:[#allocation2 + $0xb0] sm:$0xff] %v318
  %379 = vst [vmem:[#allocation2 + $0xb8] sm:$0xff] %v321
  %380 = vst [vmem:[#allocation2 + $0xc0] sm:$0xff] %v326
  %381 = vst [vmem:[#allocation2 + $0xc8] sm:$0xff] %v329
  %382 = vst [vmem:[#allocation2 + $0xd0] sm:$0xff] %v334
  %383 = vst [vmem:[#allocation2 + $0xd8] sm:$0xff] %v337
  %384 = vst [vmem:[#allocation2 + $0xe0] sm:$0xff] %v342
  %385 = vst [vmem:[#allocation2 + $0xe8] sm:$0xff] %v345
  %386 = vst [vmem:[#allocation2 + $0xf0] sm:$0xff] %v350
  %387 = vst [vmem:[#allocation2 + $0xf8] sm:$0xff] %v353
  %v388 = vld [vmem:[#allocation2] sm:$0xff]
  %v389 = vld [vmem:[#allocation2 + $0x8] sm:$0xff]
  %v390 = vld [vmem:[#allocation2 + $0x10] sm:$0xff]
  %v391 = vld [vmem:[#allocation2 + $0x18] sm:$0xff]
  %v396 = vunpack.c.l.b16 %v19
  %v397 = vunpack.c.l.b16 %v20
  %v398 = vunpack.c.l.b16 %v21
  %v399 = vunpack.c.l.b16 %v22
  %v400 = vpack.c.b16 %v397, %v396
  %v401 = vpack.c.b16 %v399, %v398
  %vm404 = vcmask 261120
  %v406 = vsel %vm404, 0, 0
  %408 = vmatprep.subr.bf16.mxu0 0
  %409 = vmatpush1.bf16.msra.mxu0 %v400
  %410 = vmatprep.subr.bf16.mxu0 0
  %411 = vmatpush1.bf16.msra.mxu0 %v401
  %412 = vmatprep.subr.bf16.mxu0 0
  %413 = vmatpush1.bf16.msra.mxu0 0
  %414 = vmatprep.subr.bf16.mxu0 0
  %415 = vmatpush1.bf16.msra.mxu0 0
  %416 = vmatprep.subr.bf16.mxu0 0
  %417 = vmatpush1.bf16.msra.mxu0 0
  %418 = vmatprep.subr.bf16.mxu0 0
  %419 = vmatpush1.bf16.msra.mxu0 0
  %420 = vmatprep.subr.bf16.mxu0 0
  %421 = vmatpush1.bf16.msra.mxu0 0
  %422 = vmatprep.subr.bf16.mxu0 0
  %423 = vmatpush1.bf16.msra.mxu0 0
  %424 = vmatprep.subr.bf16.mxu0 0
  %425 = vmatpush1.bf16.msra.mxu0 0
  %426 = vmatprep.subr.bf16.mxu0 0
  %427 = vmatpush1.bf16.msra.mxu0 0
  %428 = vmatprep.subr.bf16.mxu0 0
  %429 = vmatpush1.bf16.msra.mxu0 0
  %430 = vmatprep.subr.bf16.mxu0 0
  %431 = vmatpush1.bf16.msra.mxu0 0
  %432 = vmatprep.subr.bf16.mxu0 0
  %433 = vmatpush1.bf16.msra.mxu0 0
  %434 = vmatprep.subr.bf16.mxu0 0
  %435 = vmatpush1.bf16.msra.mxu0 0
  %436 = vmatprep.subr.bf16.mxu0 0
  %437 = vmatpush1.bf16.msra.mxu0 0
  %438 = vmatprep.subr.bf16.mxu0 0
  %439 = vmatpush1.bf16.msra.mxu0 0
  %440 = vmatprep.mubr.bf16.mxu0 0
  %441 = vmatmul.mubr.bf16.gmra.mrb[0].mxu0 %v406
  %v442 = vpop.f32.mrb[0].mxu0
  %v443 = vadd.f32 0.0, %v442
  %v444 = vpop.f32.mrb[0].mxu0
  %v445 = vpop.f32.mrb[0].mxu0
  %v446 = vadd.f32 0.0, %v445
  %v447 = vpop.f32.mrb[0].mxu0
  %448 = vmatprep.mubr.bf16.mxu0 0
  %449 = vmatmul.mubr.bf16.gmra.mrb[0].mxu0 %v406
  %v450 = vpop.f32.mrb[0].mxu0
  %v451 = vadd.f32 0.0, %v450
  %v452 = vpop.f32.mrb[0].mxu0
  %v453 = vpop.f32.mrb[0].mxu0
  %v454 = vadd.f32 0.0, %v453
  %v455 = vpop.f32.mrb[0].mxu0
  %456 = vdwg.mxu0
  %v457 = vadd.f32 %v388, %v443
  %v458 = vadd.f32 %v389, %v446
  %v459 = vadd.f32 %v390, %v451
  %v460 = vadd.f32 %v391, %v454
  %v461 = vxor.u32 %v457, 2147483648
  %v462 = vxor.u32 %v458, 2147483648
  %v463 = vxor.u32 %v459, 2147483648
  %v464 = vxor.u32 %v460, 2147483648
  %v465 = vmul.f32 %v461, 1.442695
  %v466 = vpow.pop %v465
  %v467 = vmul.f32 %v462, 1.442695
  %v468 = vpow.pop %v467
  %v469 = vmul.f32 %v463, 1.442695
  %v470 = vpow.pop %v469
  %v471 = vmul.f32 %v464, 1.442695
  %v472 = vpow.pop %v471
  %v473 = vadd.f32 %v466, 1.0
  %v474 = vadd.f32 %v468, 1.0
  %v475 = vadd.f32 %v470, 1.0
  %v476 = vadd.f32 %v472, 1.0
  %v477 = vrcp.pop %v473
  %v478 = vmul.f32 1.0, %v477
  %v479 = vrcp.pop %v474
  %v480 = vmul.f32 1.0, %v479
  %v481 = vrcp.pop %v475
  %v482 = vmul.f32 1.0, %v481
  %v483 = vrcp.pop %v476
  %v484 = vmul.f32 1.0, %v483
  %v485 = vtanh.pop %v457
  %v486 = vtanh.pop %v458
  %v487 = vtanh.pop %v459
  %v488 = vtanh.pop %v460
  %v489 = vmul.f32 %v478, 0.0
  %v490 = vmul.f32 %v480, 0.0
  %v491 = vmul.f32 %v482, 0.0
  %v492 = vmul.f32 %v484, 0.0
  %497 = vrot.lane.b32.xlu0 %v485, 32
  %v498 = vpop.permute.xlu0 %497
  %499 = vrot.lane.b32.xlu0 %v486, 32
  %v500 = vpop.permute.xlu0 %499
  %501 = vrot.lane.b32.xlu0 %v487, 32
  %v502 = vpop.permute.xlu0 %501
  %503 = vrot.lane.b32.xlu0 %v488, 32
  %v504 = vpop.permute.xlu0 %503
  %v509 = vmul.f32 %v478, %v498
  %v510 = vmul.f32 %v480, %v500
  %v511 = vmul.f32 %v482, %v502
  %v512 = vmul.f32 %v484, %v504
  %517 = vrot.lane.b32.xlu0 %v509, 32
  %v518 = vpop.permute.xlu0 %517
  %519 = vrot.lane.b32.xlu0 %v510, 32
  %v520 = vpop.permute.xlu0 %519
  %521 = vrot.lane.b32.xlu0 %v511, 32
  %v522 = vpop.permute.xlu0 %521
  %523 = vrot.lane.b32.xlu0 %v512, 32
  %v524 = vpop.permute.xlu0 %523
  %v529 = vadd.f32 %v489, %v518
  %v530 = vadd.f32 %v490, %v520
  %v531 = vadd.f32 %v491, %v522
  %v532 = vadd.f32 %v492, %v524
  %v533 = vtanh.pop %v529
  %v534 = vtanh.pop %v530
  %v535 = vtanh.pop %v531
  %v536 = vtanh.pop %v532
  %541 = vrot.lane.b32.xlu0 %v533, 32
  %v542 = vpop.permute.xlu0 %541
  %543 = vrot.lane.b32.xlu0 %v534, 32
  %v544 = vpop.permute.xlu0 %543
  %545 = vrot.lane.b32.xlu0 %v535, 32
  %v546 = vpop.permute.xlu0 %545
  %547 = vrot.lane.b32.xlu0 %v536, 32
  %v548 = vpop.permute.xlu0 %547
  %v553 = vmul.f32 %v478, %v542
  %v554 = vmul.f32 %v480, %v544
  %v555 = vmul.f32 %v482, %v546
  %v556 = vmul.f32 %v484, %v548
  %561 = vrot.lane.b32.xlu0 %v553, 64
  %v562 = vpop.permute.xlu0 %561
  %563 = vrot.lane.b32.xlu0 %v554, 64
  %v564 = vpop.permute.xlu0 %563
  %565 = vrot.lane.b32.xlu0 %v555, 64
  %v566 = vpop.permute.xlu0 %565
  %567 = vrot.lane.b32.xlu0 %v556, 64
  %v568 = vpop.permute.xlu0 %567
  %573 = vst.msk [vmem:[#allocation3] sm:$0xff] %vm404, %v562
  %574 = vst.msk [vmem:[#allocation3 + $0x8] sm:$0xff] %vm404, %v564
  %575 = vst.msk [vmem:[#allocation3 + $0x10] sm:$0xff] %vm404, %v566
  %576 = vst.msk [vmem:[#allocation3 + $0x18] sm:$0xff] %vm404, %v568
  %s577 = scalar_lea.vmem [#allocation2], 32
  %v578 = vld [vmem:[%s577] sm:$0xff]
  %v579 = vld [vmem:[%s577 + $0x8] sm:$0xff]
  %v580 = vld [vmem:[%s577 + $0x10] sm:$0xff]
  %v581 = vld [vmem:[%s577 + $0x18] sm:$0xff]
  %v582 = vpack.c.bf16 %v554, %v553
  %v583 = vpack.c.bf16 %v556, %v555
  %586 = vrot.lane.b32.xlu0 %v582, 64
  %v587 = vpop.permute.xlu0 %586
  %588 = vrot.lane.b32.xlu0 %v583, 64
  %v589 = vpop.permute.xlu0 %588
  %v591 = vsel %vm404, %v587, 0
  %v594 = vsel %vm404, %v589, 0
  %596 = vmatprep.subr.bf16.mxu0 0
  %597 = vmatpush1.bf16.msra.mxu0 %v400
  %598 = vmatprep.subr.bf16.mxu0 0
  %599 = vmatpush1.bf16.msra.mxu0 %v401
  %600 = vmatprep.subr.bf16.mxu0 0
  %601 = vmatpush1.bf16.msra.mxu0 0
  %602 = vmatprep.subr.bf16.mxu0 0
  %603 = vmatpush1.bf16.msra.mxu0 0
  %604 = vmatprep.subr.bf16.mxu0 0
  %605 = vmatpush1.bf16.msra.mxu0 0
  %606 = vmatprep.subr.bf16.mxu0 0
  %607 = vmatpush1.bf16.msra.mxu0 0
  %608 = vmatprep.subr.bf16.mxu0 0
  %609 = vmatpush1.bf16.msra.mxu0 0
  %610 = vmatprep.subr.bf16.mxu0 0
  %611 = vmatpush1.bf16.msra.mxu0 0
  %612 = vmatprep.subr.bf16.mxu0 0
  %613 = vmatpush1.bf16.msra.mxu0 0
  %614 = vmatprep.subr.bf16.mxu0 0
  %615 = vmatpush1.bf16.msra.mxu0 0
  %616 = vmatprep.subr.bf16.mxu0 0
  %617 = vmatpush1.bf16.msra.mxu0 0
  %618 = vmatprep.subr.bf16.mxu0 0
  %619 = vmatpush1.bf16.msra.mxu0 0
  %620 = vmatprep.subr.bf16.mxu0 0
  %621 = vmatpush1.bf16.msra.mxu0 0
  %622 = vmatprep.subr.bf16.mxu0 0
  %623 = vmatpush1.bf16.msra.mxu0 0
  %624 = vmatprep.subr.bf16.mxu0 0
  %625 = vmatpush1.bf16.msra.mxu0 0
  %626 = vmatprep.subr.bf16.mxu0 0
  %627 = vmatpush1.bf16.msra.mxu0 0
  %628 = vmatprep.mubr.bf16.mxu0 0
  %629 = vmatmul.mubr.bf16.gmra.mrb[0].mxu0 %v591
  %v630 = vpop.f32.mrb[0].mxu0
  %v631 = vadd.f32 0.0, %v630
  %v632 = vpop.f32.mrb[0].mxu0
  %v633 = vpop.f32.mrb[0].mxu0
  %v634 = vadd.f32 0.0, %v633
  %v635 = vpop.f32.mrb[0].mxu0
  %636 = vmatprep.mubr.bf16.mxu0 0
  %637 = vmatmul.mubr.bf16.gmra.mrb[0].mxu0 %v594
  %v638 = vpop.f32.mrb[0].mxu0
  %v639 = vadd.f32 0.0, %v638
  %v640 = vpop.f32.mrb[0].mxu0
  %v641 = vpop.f32.mrb[0].mxu0
  %v642 = vadd.f32 0.0, %v641
  %v643 = vpop.f32.mrb[0].mxu0
  %644 = vdwg.mxu0
  %v645 = vadd.f32 %v578, %v631
  %v646 = vadd.f32 %v579, %v634
  %v647 = vadd.f32 %v580, %v639
  %v648 = vadd.f32 %v581, %v642
  %v649 = vxor.u32 %v645, 2147483648
  %v650 = vxor.u32 %v646, 2147483648
  %v651 = vxor.u32 %v647, 2147483648
  %v652 = vxor.u32 %v648, 2147483648
  %v653 = vmul.f32 %v649, 1.442695
  %v654 = vpow.pop %v653
  %v655 = vmul.f32 %v650, 1.442695
  %v656 = vpow.pop %v655
  %v657 = vmul.f32 %v651, 1.442695
  %v658 = vpow.pop %v657
  %v659 = vmul.f32 %v652, 1.442695
  %v660 = vpow.pop %v659
  %v661 = vadd.f32 %v654, 1.0
  %v662 = vadd.f32 %v656, 1.0
  %v663 = vadd.f32 %v658, 1.0
  %v664 = vadd.f32 %v660, 1.0
  %v665 = vrcp.pop %v661
  %v666 = vmul.f32 1.0, %v665
  %v667 = vrcp.pop %v662
  %v668 = vmul.f32 1.0, %v667
  %v669 = vrcp.pop %v663
  %v670 = vmul.f32 1.0, %v669
  %v671 = vrcp.pop %v664
  %v672 = vmul.f32 1.0, %v671
  %v673 = vtanh.pop %v645
  %v674 = vtanh.pop %v646
  %v675 = vtanh.pop %v647
  %v676 = vtanh.pop %v648
  %v677 = vmul.f32 %v666, %v529
  %v678 = vmul.f32 %v668, %v530
  %v679 = vmul.f32 %v670, %v531
  %v680 = vmul.f32 %v672, %v532
  %685 = vrot.lane.b32.xlu0 %v673, 32
  %v686 = vpop.permute.xlu0 %685
  %687 = vrot.lane.b32.xlu0 %v674, 32
  %v688 = vpop.permute.xlu0 %687
  %689 = vrot.lane.b32.xlu0 %v675, 32
  %v690 = vpop.permute.xlu0 %689
  %691 = vrot.lane.b32.xlu0 %v676, 32
  %v692 = vpop.permute.xlu0 %691
  %v697 = vmul.f32 %v666, %v686
  %v698 = vmul.f32 %v668, %v688
  %v699 = vmul.f32 %v670, %v690
  %v700 = vmul.f32 %v672, %v692
  %705 = vrot.lane.b32.xlu0 %v697, 32
  %v706 = vpop.permute.xlu0 %705
  %707 = vrot.lane.b32.xlu0 %v698, 32
  %v708 = vpop.permute.xlu0 %707
  %709 = vrot.lane.b32.xlu0 %v699, 32
  %v710 = vpop.permute.xlu0 %709
  %711 = vrot.lane.b32.xlu0 %v700, 32
  %v712 = vpop.permute.xlu0 %711
  %v717 = vadd.f32 %v677, %v706
  %v718 = vadd.f32 %v678, %v708
  %v719 = vadd.f32 %v679, %v710
  %v720 = vadd.f32 %v680, %v712
  %v721 = vtanh.pop %v717
  %v722 = vtanh.pop %v718
  %v723 = vtanh.pop %v719
  %v724 = vtanh.pop %v720
  %729 = vrot.lane.b32.xlu0 %v721, 32
  %v730 = vpop.permute.xlu0 %729
  %731 = vrot.lane.b32.xlu0 %v722, 32
  %v732 = vpop.permute.xlu0 %731
  %733 = vrot.lane.b32.xlu0 %v723, 32
  %v734 = vpop.permute.xlu0 %733
  %735 = vrot.lane.b32.xlu0 %v724, 32
  %v736 = vpop.permute.xlu0 %735
  %v741 = vmul.f32 %v666, %v730
  %v742 = vmul.f32 %v668, %v732
  %v743 = vmul.f32 %v670, %v734
  %v744 = vmul.f32 %v672, %v736
  %749 = vrot.lane.b32.xlu0 %v741, 64
  %v750 = vpop.permute.xlu0 %749
  %751 = vrot.lane.b32.xlu0 %v742, 64
  %v752 = vpop.permute.xlu0 %751
  %753 = vrot.lane.b32.xlu0 %v743, 64
  %v754 = vpop.permute.xlu0 %753
  %755 = vrot.lane.b32.xlu0 %v744, 64
  %v756 = vpop.permute.xlu0 %755
  %s761 = scalar_lea.vmem [#allocation3], 32
  %762 = vst.msk [vmem:[%s761] sm:$0xff] %vm404, %v750
  %763 = vst.msk [vmem:[%s761 + $0x8] sm:$0xff] %vm404, %v752
  %764 = vst.msk [vmem:[%s761 + $0x10] sm:$0xff] %vm404, %v754
  %765 = vst.msk [vmem:[%s761 + $0x18] sm:$0xff] %vm404, %v756
  %s766 = scalar_lea.vmem [#allocation2], 64
  %v767 = vld [vmem:[%s766] sm:$0xff]
  %v768 = vld [vmem:[%s766 + $0x8] sm:$0xff]
  %v769 = vld [vmem:[%s766 + $0x10] sm:$0xff]
  %v770 = vld [vmem:[%s766 + $0x18] sm:$0xff]
  %v771 = vpack.c.bf16 %v742, %v741
  %v772 = vpack.c.bf16 %v744, %v743
  %775 = vrot.lane.b32.xlu0 %v771, 64
  %v776 = vpop.permute.xlu0 %775
  %777 = vrot.lane.b32.xlu0 %v772, 64
  %v778 = vpop.permute.xlu0 %777
  %v780 = vsel %vm404, %v776, 0
  %v783 = vsel %vm404, %v778, 0
  %785 = vmatprep.subr.bf16.mxu0 0
  %786 = vmatpush1.bf16.msra.mxu0 %v400
  %787 = vmatprep.subr.bf16.mxu0 0
  %788 = vmatpush1.bf16.msra.mxu0 %v401
  %789 = vmatprep.subr.bf16.mxu0 0
  %790 = vmatpush1.bf16.msra.mxu0 0
  %791 = vmatprep.subr.bf16.mxu0 0
  %792 = vmatpush1.bf16.msra.mxu0 0
  %793 = vmatprep.subr.bf16.mxu0 0
  %794 = vmatpush1.bf16.msra.mxu0 0
  %795 = vmatprep.subr.bf16.mxu0 0
  %796 = vmatpush1.bf16.msra.mxu0 0
  %797 = vmatprep.subr.bf16.mxu0 0
  %798 = vmatpush1.bf16.msra.mxu0 0
  %799 = vmatprep.subr.bf16.mxu0 0
  %800 = vmatpush1.bf16.msra.mxu0 0
  %801 = vmatprep.subr.bf16.mxu0 0
  %802 = vmatpush1.bf16.msra.mxu0 0
  %803 = vmatprep.subr.bf16.mxu0 0
  %804 = vmatpush1.bf16.msra.mxu0 0
  %805 = vmatprep.subr.bf16.mxu0 0
  %806 = vmatpush1.bf16.msra.mxu0 0
  %807 = vmatprep.subr.bf16.mxu0 0
  %808 = vmatpush1.bf16.msra.mxu0 0
  %809 = vmatprep.subr.bf16.mxu0 0
  %810 = vmatpush1.bf16.msra.mxu0 0
  %811 = vmatprep.subr.bf16.mxu0 0
  %812 = vmatpush1.bf16.msra.mxu0 0
  %813 = vmatprep.subr.bf16.mxu0 0
  %814 = vmatpush1.bf16.msra.mxu0 0
  %815 = vmatprep.subr.bf16.mxu0 0
  %816 = vmatpush1.bf16.msra.mxu0 0
  %817 = vmatprep.mubr.bf16.mxu0 0
  %818 = vmatmul.mubr.bf16.gmra.mrb[0].mxu0 %v780
  %v819 = vpop.f32.mrb[0].mxu0
  %v820 = vadd.f32 0.0, %v819
  %v821 = vpop.f32.mrb[0].mxu0
  %v822 = vpop.f32.mrb[0].mxu0
  %v823 = vadd.f32 0.0, %v822
  %v824 = vpop.f32.mrb[0].mxu0
  %825 = vmatprep.mubr.bf16.mxu0 0
  %826 = vmatmul.mubr.bf16.gmra.mrb[0].mxu0 %v783
  %v827 = vpop.f32.mrb[0].mxu0
  %v828 = vadd.f32 0.0, %v827
  %v829 = vpop.f32.mrb[0].mxu0
  %v830 = vpop.f32.mrb[0].mxu0
  %v831 = vadd.f32 0.0, %v830
  %v832 = vpop.f32.mrb[0].mxu0
  %833 = vdwg.mxu0
  %v834 = vadd.f32 %v767, %v820
  %v835 = vadd.f32 %v768, %v823
  %v836 = vadd.f32 %v769, %v828
  %v837 = vadd.f32 %v770, %v831
  %v838 = vxor.u32 %v834, 2147483648
  %v839 = vxor.u32 %v835, 2147483648
  %v840 = vxor.u32 %v836, 2147483648
  %v841 = vxor.u32 %v837, 2147483648
  %v842 = vmul.f32 %v838, 1.442695
  %v843 = vpow.pop %v842
  %v844 = vmul.f32 %v839, 1.442695
  %v845 = vpow.pop %v844
  %v846 = vmul.f32 %v840, 1.442695
  %v847 = vpow.pop %v846
  %v848 = vmul.f32 %v841, 1.442695
  %v849 = vpow.pop %v848
  %v850 = vadd.f32 %v843, 1.0
  %v851 = vadd.f32 %v845, 1.0
  %v852 = vadd.f32 %v847, 1.0
  %v853 = vadd.f32 %v849, 1.0
  %v854 = vrcp.pop %v850
  %v855 = vmul.f32 1.0, %v854
  %v856 = vrcp.pop %v851
  %v857 = vmul.f32 1.0, %v856
  %v858 = vrcp.pop %v852
  %v859 = vmul.f32 1.0, %v858
  %v860 = vrcp.pop %v853
  %v861 = vmul.f32 1.0, %v860
  %v862 = vtanh.pop %v834
  %v863 = vtanh.pop %v835
  %v864 = vtanh.pop %v836
  %v865 = vtanh.pop %v837
  %v866 = vmul.f32 %v855, %v717
  %v867 = vmul.f32 %v857, %v718
  %v868 = vmul.f32 %v859, %v719
  %v869 = vmul.f32 %v861, %v720
  %874 = vrot.lane.b32.xlu0 %v862, 32
  %v875 = vpop.permute.xlu0 %874
  %876 = vrot.lane.b32.xlu0 %v863, 32
  %v877 = vpop.permute.xlu0 %876
  %878 = vrot.lane.b32.xlu0 %v864, 32
  %v879 = vpop.permute.xlu0 %878
  %880 = vrot.lane.b32.xlu0 %v865, 32
  %v881 = vpop.permute.xlu0 %880
  %v886 = vmul.f32 %v855, %v875
  %v887 = vmul.f32 %v857, %v877
  %v888 = vmul.f32 %v859, %v879
  %v889 = vmul.f32 %v861, %v881
  %894 = vrot.lane.b32.xlu0 %v886, 32
  %v895 = vpop.permute.xlu0 %894
  %896 = vrot.lane.b32.xlu0 %v887, 32
  %v897 = vpop.permute.xlu0 %896
  %898 = vrot.lane.b32.xlu0 %v888, 32
  %v899 = vpop.permute.xlu0 %898
  %900 = vrot.lane.b32.xlu0 %v889, 32
  %v901 = vpop.permute.xlu0 %900
  %v906 = vadd.f32 %v866, %v895
  %v907 = vadd.f32 %v867, %v897
  %v908 = vadd.f32 %v868, %v899
  %v909 = vadd.f32 %v869, %v901
  %v910 = vtanh.pop %v906
  %v911 = vtanh.pop %v907
  %v912 = vtanh.pop %v908
  %v913 = vtanh.pop %v909
  %918 = vrot.lane.b32.xlu0 %v910, 32
  %v919 = vpop.permute.xlu0 %918
  %920 = vrot.lane.b32.xlu0 %v911, 32
  %v921 = vpop.permute.xlu0 %920
  %922 = vrot.lane.b32.xlu0 %v912, 32
  %v923 = vpop.permute.xlu0 %922
  %924 = vrot.lane.b32.xlu0 %v913, 32
  %v925 = vpop.permute.xlu0 %924
  %v930 = vmul.f32 %v855, %v919
  %v931 = vmul.f32 %v857, %v921
  %v932 = vmul.f32 %v859, %v923
  %v933 = vmul.f32 %v861, %v925
  %938 = vrot.lane.b32.xlu0 %v930, 64
  %v939 = vpop.permute.xlu0 %938
  %940 = vrot.lane.b32.xlu0 %v931, 64
  %v941 = vpop.permute.xlu0 %940
  %942 = vrot.lane.b32.xlu0 %v932, 64
  %v943 = vpop.permute.xlu0 %942
  %944 = vrot.lane.b32.xlu0 %v933, 64
  %v945 = vpop.permute.xlu0 %944
  %s950 = scalar_lea.vmem [#allocation3], 64
  %951 = vst.msk [vmem:[%s950] sm:$0xff] %vm404, %v939
  %952 = vst.msk [vmem:[%s950 + $0x8] sm:$0xff] %vm404, %v941
  %953 = vst.msk [vmem:[%s950 + $0x10] sm:$0xff] %vm404, %v943
  %954 = vst.msk [vmem:[%s950 + $0x18] sm:$0xff] %vm404, %v945
  %s955 = scalar_lea.vmem [#allocation2], 96
  %v956 = vld [vmem:[%s955] sm:$0xff]
  %v957 = vld [vmem:[%s955 + $0x8] sm:$0xff]
  %v958 = vld [vmem:[%s955 + $0x10] sm:$0xff]
  %v959 = vld [vmem:[%s955 + $0x18] sm:$0xff]
  %v960 = vpack.c.bf16 %v931, %v930
  %v961 = vpack.c.bf16 %v933, %v932
  %964 = vrot.lane.b32.xlu0 %v960, 64
  %v965 = vpop.permute.xlu0 %964
  %966 = vrot.lane.b32.xlu0 %v961, 64
  %v967 = vpop.permute.xlu0 %966
  %v969 = vsel %vm404, %v965, 0
  %v972 = vsel %vm404, %v967, 0
  %974 = vmatprep.subr.bf16.mxu0 0
  %975 = vmatpush1.bf16.msra.mxu0 %v400
  %976 = vmatprep.subr.bf16.mxu0 0
  %977 = vmatpush1.bf16.msra.mxu0 %v401
  %978 = vmatprep.subr.bf16.mxu0 0
  %979 = vmatpush1.bf16.msra.mxu0 0
  %980 = vmatprep.subr.bf16.mxu0 0
  %981 = vmatpush1.bf16.msra.mxu0 0
  %982 = vmatprep.subr.bf16.mxu0 0
  %983 = vmatpush1.bf16.msra.mxu0 0
  %984 = vmatprep.subr.bf16.mxu0 0
  %985 = vmatpush1.bf16.msra.mxu0 0
  %986 = vmatprep.subr.bf16.mxu0 0
  %987 = vmatpush1.bf16.msra.mxu0 0
  %988 = vmatprep.subr.bf16.mxu0 0
  %989 = vmatpush1.bf16.msra.mxu0 0
  %990 = vmatprep.subr.bf16.mxu0 0
  %991 = vmatpush1.bf16.msra.mxu0 0
  %992 = vmatprep.subr.bf16.mxu0 0
  %993 = vmatpush1.bf16.msra.mxu0 0
  %994 = vmatprep.subr.bf16.mxu0 0
  %995 = vmatpush1.bf16.msra.mxu0 0
  %996 = vmatprep.subr.bf16.mxu0 0
  %997 = vmatpush1.bf16.msra.mxu0 0
  %998 = vmatprep.subr.bf16.mxu0 0
  %999 = vmatpush1.bf16.msra.mxu0 0
  %1000 = vmatprep.subr.bf16.mxu0 0
  %1001 = vmatpush1.bf16.msra.mxu0 0
  %1002 = vmatprep.subr.bf16.mxu0 0
  %1003 = vmatpush1.bf16.msra.mxu0 0
  %1004 = vmatprep.subr.bf16.mxu0 0
  %1005 = vmatpush1.bf16.msra.mxu0 0
  %1006 = vmatprep.mubr.bf16.mxu0 0
  %1007 = vmatmul.mubr.bf16.gmra.mrb[0].mxu0 %v969
  %v1008 = vpop.f32.mrb[0].mxu0
  %v1009 = vadd.f32 0.0, %v1008
  %v1010 = vpop.f32.mrb[0].mxu0
  %v1011 = vpop.f32.mrb[0].mxu0
  %v1012 = vadd.f32 0.0, %v1011
  %v1013 = vpop.f32.mrb[0].mxu0
  %1014 = vmatprep.mubr.bf16.mxu0 0
  %1015 = vmatmul.mubr.bf16.gmra.mrb[0].mxu0 %v972
  %v1016 = vpop.f32.mrb[0].mxu0
  %v1017 = vadd.f32 0.0, %v1016
  %v1018 = vpop.f32.mrb[0].mxu0
  %v1019 = vpop.f32.mrb[0].mxu0
  %v1020 = vadd.f32 0.0, %v1019
  %v1021 = vpop.f32.mrb[0].mxu0
  %1022 = vdwg.mxu0
  %v1023 = vadd.f32 %v956, %v1009
  %v1024 = vadd.f32 %v957, %v1012
  %v1025 = vadd.f32 %v958, %v1017
  %v1026 = vadd.f32 %v959, %v1020
  %v1027 = vxor.u32 %v1023, 2147483648
  %v1028 = vxor.u32 %v1024, 2147483648
  %v1029 = vxor.u32 %v1025, 2147483648
  %v1030 = vxor.u32 %v1026, 2147483648
  %v1031 = vmul.f32 %v1027, 1.442695
  %v1032 = vpow.pop %v1031
  %v1033 = vmul.f32 %v1028, 1.442695
  %v1034 = vpow.pop %v1033
  %v1035 = vmul.f32 %v1029, 1.442695
  %v1036 = vpow.pop %v1035
  %v1037 = vmul.f32 %v1030, 1.442695
  %v1038 = vpow.pop %v1037
  %v1039 = vadd.f32 %v1032, 1.0
  %v1040 = vadd.f32 %v1034, 1.0
  %v1041 = vadd.f32 %v1036, 1.0
  %v1042 = vadd.f32 %v1038, 1.0
  %v1043 = vrcp.pop %v1039
  %v1044 = vmul.f32 1.0, %v1043
  %v1045 = vrcp.pop %v1040
  %v1046 = vmul.f32 1.0, %v1045
  %v1047 = vrcp.pop %v1041
  %v1048 = vmul.f32 1.0, %v1047
  %v1049 = vrcp.pop %v1042
  %v1050 = vmul.f32 1.0, %v1049
  %v1051 = vtanh.pop %v1023
  %v1052 = vtanh.pop %v1024
  %v1053 = vtanh.pop %v1025
  %v1054 = vtanh.pop %v1026
  %v1055 = vmul.f32 %v1044, %v906
  %v1056 = vmul.f32 %v1046, %v907
  %v1057 = vmul.f32 %v1048, %v908
  %v1058 = vmul.f32 %v1050, %v909
  %1063 = vrot.lane.b32.xlu0 %v1051, 32
  %v1064 = vpop.permute.xlu0 %1063
  %1065 = vrot.lane.b32.xlu0 %v1052, 32
  %v1066 = vpop.permute.xlu0 %1065
  %1067 = vrot.lane.b32.xlu0 %v1053, 32
  %v1068 = vpop.permute.xlu0 %1067
  %1069 = vrot.lane.b32.xlu0 %v1054, 32
  %v1070 = vpop.permute.xlu0 %1069
  %v1075 = vmul.f32 %v1044, %v1064
  %v1076 = vmul.f32 %v1046, %v1066
  %v1077 = vmul.f32 %v1048, %v1068
  %v1078 = vmul.f32 %v1050, %v1070
  %1083 = vrot.lane.b32.xlu0 %v1075, 32
  %v1084 = vpop.permute.xlu0 %1083
  %1085 = vrot.lane.b32.xlu0 %v1076, 32
  %v1086 = vpop.permute.xlu0 %1085
  %1087 = vrot.lane.b32.xlu0 %v1077, 32
  %v1088 = vpop.permute.xlu0 %1087
  %1089 = vrot.lane.b32.xlu0 %v1078, 32
  %v1090 = vpop.permute.xlu0 %1089
  %v1095 = vadd.f32 %v1055, %v1084
  %v1096 = vadd.f32 %v1056, %v1086
  %v1097 = vadd.f32 %v1057, %v1088
  %v1098 = vadd.f32 %v1058, %v1090
  %v1099 = vtanh.pop %v1095
  %v1100 = vtanh.pop %v1096
  %v1101 = vtanh.pop %v1097
  %v1102 = vtanh.pop %v1098
  %1107 = vrot.lane.b32.xlu0 %v1099, 32
  %v1108 = vpop.permute.xlu0 %1107
  %1109 = vrot.lane.b32.xlu0 %v1100, 32
  %v1110 = vpop.permute.xlu0 %1109
  %1111 = vrot.lane.b32.xlu0 %v1101, 32
  %v1112 = vpop.permute.xlu0 %1111
  %1113 = vrot.lane.b32.xlu0 %v1102, 32
  %v1114 = vpop.permute.xlu0 %1113
  %v1119 = vmul.f32 %v1044, %v1108
  %v1120 = vmul.f32 %v1046, %v1110
  %v1121 = vmul.f32 %v1048, %v1112
  %v1122 = vmul.f32 %v1050, %v1114
  %1127 = vrot.lane.b32.xlu0 %v1119, 64
  %v1128 = vpop.permute.xlu0 %1127
  %1129 = vrot.lane.b32.xlu0 %v1120, 64
  %v1130 = vpop.permute.xlu0 %1129
  %1131 = vrot.lane.b32.xlu0 %v1121, 64
  %v1132 = vpop.permute.xlu0 %1131
  %1133 = vrot.lane.b32.xlu0 %v1122, 64
  %v1134 = vpop.permute.xlu0 %1133
  %s1139 = scalar_lea.vmem [#allocation3], 96
  %1140 = vst.msk [vmem:[%s1139] sm:$0xff] %vm404, %v1128
  %1141 = vst.msk [vmem:[%s1139 + $0x8] sm:$0xff] %vm404, %v1130
  %1142 = vst.msk [vmem:[%s1139 + $0x10] sm:$0xff] %vm404, %v1132
  %1143 = vst.msk [vmem:[%s1139 + $0x18] sm:$0xff] %vm404, %v1134
  %s1144 = scalar_lea.vmem [#allocation2], 128
  %v1145 = vld [vmem:[%s1144] sm:$0xff]
  %v1146 = vld [vmem:[%s1144 + $0x8] sm:$0xff]
  %v1147 = vld [vmem:[%s1144 + $0x10] sm:$0xff]
  %v1148 = vld [vmem:[%s1144 + $0x18] sm:$0xff]
  %v1149 = vpack.c.bf16 %v1120, %v1119
  %v1150 = vpack.c.bf16 %v1122, %v1121
  %1153 = vrot.lane.b32.xlu0 %v1149, 64
  %v1154 = vpop.permute.xlu0 %1153
  %1155 = vrot.lane.b32.xlu0 %v1150, 64
  %v1156 = vpop.permute.xlu0 %1155
  %v1158 = vsel %vm404, %v1154, 0
  %v1161 = vsel %vm404, %v1156, 0
  %1163 = vmatprep.subr.bf16.mxu0 0
  %1164 = vmatpush1.bf16.msra.mxu0 %v400
  %1165 = vmatprep.subr.bf16.mxu0 0
  %1166 = vmatpush1.bf16.msra.mxu0 %v401
  %1167 = vmatprep.subr.bf16.mxu0 0
  %1168 = vmatpush1.bf16.msra.mxu0 0
  %1169 = vmatprep.subr.bf16.mxu0 0
  %1170 = vmatpush1.bf16.msra.mxu0 0
  %1171 = vmatprep.subr.bf16.mxu0 0
  %1172 = vmatpush1.bf16.msra.mxu0 0
  %1173 = vmatprep.subr.bf16.mxu0 0
  %1174 = vmatpush1.bf16.msra.mxu0 0
  %1175 = vmatprep.subr.bf16.mxu0 0
  %1176 = vmatpush1.bf16.msra.mxu0 0
  %1177 = vmatprep.subr.bf16.mxu0 0
  %1178 = vmatpush1.bf16.msra.mxu0 0
  %1179 = vmatprep.subr.bf16.mxu0 0
  %1180 = vmatpush1.bf16.msra.mxu0 0
  %1181 = vmatprep.subr.bf16.mxu0 0
  %1182 = vmatpush1.bf16.msra.mxu0 0
  %1183 = vmatprep.subr.bf16.mxu0 0
  %1184 = vmatpush1.bf16.msra.mxu0 0
  %1185 = vmatprep.subr.bf16.mxu0 0
  %1186 = vmatpush1.bf16.msra.mxu0 0
  %1187 = vmatprep.subr.bf16.mxu0 0
  %1188 = vmatpush1.bf16.msra.mxu0 0
  %1189 = vmatprep.subr.bf16.mxu0 0
  %1190 = vmatpush1.bf16.msra.mxu0 0
  %1191 = vmatprep.subr.bf16.mxu0 0
  %1192 = vmatpush1.bf16.msra.mxu0 0
  %1193 = vmatprep.subr.bf16.mxu0 0
  %1194 = vmatpush1.bf16.msra.mxu0 0
  %1195 = vmatprep.mubr.bf16.mxu0 0
  %1196 = vmatmul.mubr.bf16.gmra.mrb[0].mxu0 %v1158
  %v1197 = vpop.f32.mrb[0].mxu0
  %v1198 = vadd.f32 0.0, %v1197
  %v1199 = vpop.f32.mrb[0].mxu0
  %v1200 = vpop.f32.mrb[0].mxu0
  %v1201 = vadd.f32 0.0, %v1200
  %v1202 = vpop.f32.mrb[0].mxu0
  %1203 = vmatprep.mubr.bf16.mxu0 0
  %1204 = vmatmul.mubr.bf16.gmra.mrb[0].mxu0 %v1161
  %v1205 = vpop.f32.mrb[0].mxu0
  %v1206 = vadd.f32 0.0, %v1205
  %v1207 = vpop.f32.mrb[0].mxu0
  %v1208 = vpop.f32.mrb[0].mxu0
  %v1209 = vadd.f32 0.0, %v1208
  %v1210 = vpop.f32.mrb[0].mxu0
  %1211 = vdwg.mxu0
  %v1212 = vadd.f32 %v1145, %v1198
  %v1213 = vadd.f32 %v1146, %v1201
  %v1214 = vadd.f32 %v1147, %v1206
  %v1215 = vadd.f32 %v1148, %v1209
  %v1216 = vxor.u32 %v1212, 2147483648
  %v1217 = vxor.u32 %v1213, 2147483648
  %v1218 = vxor.u32 %v1214, 2147483648
  %v1219 = vxor.u32 %v1215, 2147483648
  %v1220 = vmul.f32 %v1216, 1.442695
  %v1221 = vpow.pop %v1220
  %v1222 = vmul.f32 %v1217, 1.442695
  %v1223 = vpow.pop %v1222
  %v1224 = vmul.f32 %v1218, 1.442695
  %v1225 = vpow.pop %v1224
  %v1226 = vmul.f32 %v1219, 1.442695
  %v1227 = vpow.pop %v1226
  %v1228 = vadd.f32 %v1221, 1.0
  %v1229 = vadd.f32 %v1223, 1.0
  %v1230 = vadd.f32 %v1225, 1.0
  %v1231 = vadd.f32 %v1227, 1.0
  %v1232 = vrcp.pop %v1228
  %v1233 = vmul.f32 1.0, %v1232
  %v1234 = vrcp.pop %v1229
  %v1235 = vmul.f32 1.0, %v1234
  %v1236 = vrcp.pop %v1230
  %v1237 = vmul.f32 1.0, %v1236
  %v1238 = vrcp.pop %v1231
  %v1239 = vmul.f32 1.0, %v1238
  %v1240 = vtanh.pop %v1212
  %v1241 = vtanh.pop %v1213
  %v1242 = vtanh.pop %v1214
  %v1243 = vtanh.pop %v1215
  %v1244 = vmul.f32 %v1233, %v1095
  %v1245 = vmul.f32 %v1235, %v1096
  %v1246 = vmul.f32 %v1237, %v1097
  %v1247 = vmul.f32 %v1239, %v1098
  %1252 = vrot.lane.b32.xlu0 %v1240, 32
  %v1253 = vpop.permute.xlu0 %1252
  %1254 = vrot.lane.b32.xlu0 %v1241, 32
  %v1255 = vpop.permute.xlu0 %1254
  %1256 = vrot.lane.b32.xlu0 %v1242, 32
  %v1257 = vpop.permute.xlu0 %1256
  %1258 = vrot.lane.b32.xlu0 %v1243, 32
  %v1259 = vpop.permute.xlu0 %1258
  %v1264 = vmul.f32 %v1233, %v1253
  %v1265 = vmul.f32 %v1235, %v1255
  %v1266 = vmul.f32 %v1237, %v1257
  %v1267 = vmul.f32 %v1239, %v1259
  %1272 = vrot.lane.b32.xlu0 %v1264, 32
  %v1273 = vpop.permute.xlu0 %1272
  %1274 = vrot.lane.b32.xlu0 %v1265, 32
  %v1275 = vpop.permute.xlu0 %1274
  %1276 = vrot.lane.b32.xlu0 %v1266, 32
  %v1277 = vpop.permute.xlu0 %1276
  %1278 = vrot.lane.b32.xlu0 %v1267, 32
  %v1279 = vpop.permute.xlu0 %1278
  %v1284 = vadd.f32 %v1244, %v1273
  %v1285 = vadd.f32 %v1245, %v1275
  %v1286 = vadd.f32 %v1246, %v1277
  %v1287 = vadd.f32 %v1247, %v1279
  %v1288 = vtanh.pop %v1284
  %v1289 = vtanh.pop %v1285
  %v1290 = vtanh.pop %v1286
  %v1291 = vtanh.pop %v1287
  %1296 = vrot.lane.b32.xlu0 %v1288, 32
  %v1297 = vpop.permute.xlu0 %1296
  %1298 = vrot.lane.b32.xlu0 %v1289, 32
  %v1299 = vpop.permute.xlu0 %1298
  %1300 = vrot.lane.b32.xlu0 %v1290, 32
  %v1301 = vpop.permute.xlu0 %1300
  %1302 = vrot.lane.b32.xlu0 %v1291, 32
  %v1303 = vpop.permute.xlu0 %1302
  %v1308 = vmul.f32 %v1233, %v1297
  %v1309 = vmul.f32 %v1235, %v1299
  %v1310 = vmul.f32 %v1237, %v1301
  %v1311 = vmul.f32 %v1239, %v1303
  %1316 = vrot.lane.b32.xlu0 %v1308, 64
  %v1317 = vpop.permute.xlu0 %1316
  %1318 = vrot.lane.b32.xlu0 %v1309, 64
  %v1319 = vpop.permute.xlu0 %1318
  %1320 = vrot.lane.b32.xlu0 %v1310, 64
  %v1321 = vpop.permute.xlu0 %1320
  %1322 = vrot.lane.b32.xlu0 %v1311, 64
  %v1323 = vpop.permute.xlu0 %1322
  %s1328 = scalar_lea.vmem [#allocation3], 128
  %1329 = vst.msk [vmem:[%s1328] sm:$0xff] %vm404, %v1317
  %1330 = vst.msk [vmem:[%s1328 + $0x8] sm:$0xff] %vm404, %v1319
  %1331 = vst.msk [vmem:[%s1328 + $0x10] sm:$0xff] %vm404, %v1321
  %1332 = vst.msk [vmem:[%s1328 + $0x18] sm:$0xff] %vm404, %v1323
  %s1333 = scalar_lea.vmem [#allocation2], 160
  %v1334 = vld [vmem:[%s1333] sm:$0xff]
  %v1335 = vld [vmem:[%s1333 + $0x8] sm:$0xff]
  %v1336 = vld [vmem:[%s1333 + $0x10] sm:$0xff]
  %v1337 = vld [vmem:[%s1333 + $0x18] sm:$0xff]
  %v1338 = vpack.c.bf16 %v1309, %v1308
  %v1339 = vpack.c.bf16 %v1311, %v1310
  %1342 = vrot.lane.b32.xlu0 %v1338, 64
  %v1343 = vpop.permute.xlu0 %1342
  %1344 = vrot.lane.b32.xlu0 %v1339, 64
  %v1345 = vpop.permute.xlu0 %1344
  %v1347 = vsel %vm404, %v1343, 0
  %v1350 = vsel %vm404, %v1345, 0
  %1352 = vmatprep.subr.bf16.mxu0 0
  %1353 = vmatpush1.bf16.msra.mxu0 %v400
  %1354 = vmatprep.subr.bf16.mxu0 0
  %1355 = vmatpush1.bf16.msra.mxu0 %v401
  %1356 = vmatprep.subr.bf16.mxu0 0
  %1357 = vmatpush1.bf16.msra.mxu0 0
  %1358 = vmatprep.subr.bf16.mxu0 0
  %1359 = vmatpush1.bf16.msra.mxu0 0
  %1360 = vmatprep.subr.bf16.mxu0 0
  %1361 = vmatpush1.bf16.msra.mxu0 0
  %1362 = vmatprep.subr.bf16.mxu0 0
  %1363 = vmatpush1.bf16.msra.mxu0 0
  %1364 = vmatprep.subr.bf16.mxu0 0
  %1365 = vmatpush1.bf16.msra.mxu0 0
  %1366 = vmatprep.subr.bf16.mxu0 0
  %1367 = vmatpush1.bf16.msra.mxu0 0
  %1368 = vmatprep.subr.bf16.mxu0 0
  %1369 = vmatpush1.bf16.msra.mxu0 0
  %1370 = vmatprep.subr.bf16.mxu0 0
  %1371 = vmatpush1.bf16.msra.mxu0 0
  %1372 = vmatprep.subr.bf16.mxu0 0
  %1373 = vmatpush1.bf16.msra.mxu0 0
  %1374 = vmatprep.subr.bf16.mxu0 0
  %1375 = vmatpush1.bf16.msra.mxu0 0
  %1376 = vmatprep.subr.bf16.mxu0 0
  %1377 = vmatpush1.bf16.msra.mxu0 0
  %1378 = vmatprep.subr.bf16.mxu0 0
  %1379 = vmatpush1.bf16.msra.mxu0 0
  %1380 = vmatprep.subr.bf16.mxu0 0
  %1381 = vmatpush1.bf16.msra.mxu0 0
  %1382 = vmatprep.subr.bf16.mxu0 0
  %1383 = vmatpush1.bf16.msra.mxu0 0
  %1384 = vmatprep.mubr.bf16.mxu0 0
  %1385 = vmatmul.mubr.bf16.gmra.mrb[0].mxu0 %v1347
  %v1386 = vpop.f32.mrb[0].mxu0
  %v1387 = vadd.f32 0.0, %v1386
  %v1388 = vpop.f32.mrb[0].mxu0
  %v1389 = vpop.f32.mrb[0].mxu0
  %v1390 = vadd.f32 0.0, %v1389
  %v1391 = vpop.f32.mrb[0].mxu0
  %1392 = vmatprep.mubr.bf16.mxu0 0
  %1393 = vmatmul.mubr.bf16.gmra.mrb[0].mxu0 %v1350
  %v1394 = vpop.f32.mrb[0].mxu0
  %v1395 = vadd.f32 0.0, %v1394
  %v1396 = vpop.f32.mrb[0].mxu0
  %v1397 = vpop.f32.mrb[0].mxu0
  %v1398 = vadd.f32 0.0, %v1397
  %v1399 = vpop.f32.mrb[0].mxu0
  %1400 = vdwg.mxu0
  %v1401 = vadd.f32 %v1334, %v1387
  %v1402 = vadd.f32 %v1335, %v1390
  %v1403 = vadd.f32 %v1336, %v1395
  %v1404 = vadd.f32 %v1337, %v1398
  %v1405 = vxor.u32 %v1401, 2147483648
  %v1406 = vxor.u32 %v1402, 2147483648
  %v1407 = vxor.u32 %v1403, 2147483648
  %v1408 = vxor.u32 %v1404, 2147483648
  %v1409 = vmul.f32 %v1405, 1.442695
  %v1410 = vpow.pop %v1409
  %v1411 = vmul.f32 %v1406, 1.442695
  %v1412 = vpow.pop %v1411
  %v1413 = vmul.f32 %v1407, 1.442695
  %v1414 = vpow.pop %v1413
  %v1415 = vmul.f32 %v1408, 1.442695
  %v1416 = vpow.pop %v1415
  %v1417 = vadd.f32 %v1410, 1.0
  %v1418 = vadd.f32 %v1412, 1.0
  %v1419 = vadd.f32 %v1414, 1.0
  %v1420 = vadd.f32 %v1416, 1.0
  %v1421 = vrcp.pop %v1417
  %v1422 = vmul.f32 1.0, %v1421
  %v1423 = vrcp.pop %v1418
  %v1424 = vmul.f32 1.0, %v1423
  %v1425 = vrcp.pop %v1419
  %v1426 = vmul.f32 1.0, %v1425
  %v1427 = vrcp.pop %v1420
  %v1428 = vmul.f32 1.0, %v1427
  %v1429 = vtanh.pop %v1401
  %v1430 = vtanh.pop %v1402
  %v1431 = vtanh.pop %v1403
  %v1432 = vtanh.pop %v1404
  %v1433 = vmul.f32 %v1422, %v1284
  %v1434 = vmul.f32 %v1424, %v1285
  %v1435 = vmul.f32 %v1426, %v1286
  %v1436 = vmul.f32 %v1428, %v1287
  %1441 = vrot.lane.b32.xlu0 %v1429, 32
  %v1442 = vpop.permute.xlu0 %1441
  %1443 = vrot.lane.b32.xlu0 %v1430, 32
  %v1444 = vpop.permute.xlu0 %1443
  %1445 = vrot.lane.b32.xlu0 %v1431, 32
  %v1446 = vpop.permute.xlu0 %1445
  %1447 = vrot.lane.b32.xlu0 %v1432, 32
  %v1448 = vpop.permute.xlu0 %1447
  %v1453 = vmul.f32 %v1422, %v1442
  %v1454 = vmul.f32 %v1424, %v1444
  %v1455 = vmul.f32 %v1426, %v1446
  %v1456 = vmul.f32 %v1428, %v1448
  %1461 = vrot.lane.b32.xlu0 %v1453, 32
  %v1462 = vpop.permute.xlu0 %1461
  %1463 = vrot.lane.b32.xlu0 %v1454, 32
  %v1464 = vpop.permute.xlu0 %1463
  %1465 = vrot.lane.b32.xlu0 %v1455, 32
  %v1466 = vpop.permute.xlu0 %1465
  %1467 = vrot.lane.b32.xlu0 %v1456, 32
  %v1468 = vpop.permute.xlu0 %1467
  %v1473 = vadd.f32 %v1433, %v1462
  %v1474 = vadd.f32 %v1434, %v1464
  %v1475 = vadd.f32 %v1435, %v1466
  %v1476 = vadd.f32 %v1436, %v1468
  %v1477 = vtanh.pop %v1473
  %v1478 = vtanh.pop %v1474
  %v1479 = vtanh.pop %v1475
  %v1480 = vtanh.pop %v1476
  %1485 = vrot.lane.b32.xlu0 %v1477, 32
  %v1486 = vpop.permute.xlu0 %1485
  %1487 = vrot.lane.b32.xlu0 %v1478, 32
  %v1488 = vpop.permute.xlu0 %1487
  %1489 = vrot.lane.b32.xlu0 %v1479, 32
  %v1490 = vpop.permute.xlu0 %1489
  %1491 = vrot.lane.b32.xlu0 %v1480, 32
  %v1492 = vpop.permute.xlu0 %1491
  %v1497 = vmul.f32 %v1422, %v1486
  %v1498 = vmul.f32 %v1424, %v1488
  %v1499 = vmul.f32 %v1426, %v1490
  %v1500 = vmul.f32 %v1428, %v1492
  %1505 = vrot.lane.b32.xlu0 %v1497, 64
  %v1506 = vpop.permute.xlu0 %1505
  %1507 = vrot.lane.b32.xlu0 %v1498, 64
  %v1508 = vpop.permute.xlu0 %1507
  %1509 = vrot.lane.b32.xlu0 %v1499, 64
  %v1510 = vpop.permute.xlu0 %1509
  %1511 = vrot.lane.b32.xlu0 %v1500, 64
  %v1512 = vpop.permute.xlu0 %1511
  %s1517 = scalar_lea.vmem [#allocation3], 160
  %1518 = vst.msk [vmem:[%s1517] sm:$0xff] %vm404, %v1506
  %1519 = vst.msk [vmem:[%s1517 + $0x8] sm:$0xff] %vm404, %v1508
  %1520 = vst.msk [vmem:[%s1517 + $0x10] sm:$0xff] %vm404, %v1510
  %1521 = vst.msk [vmem:[%s1517 + $0x18] sm:$0xff] %vm404, %v1512
  %s1522 = scalar_lea.vmem [#allocation2], 192
  %v1523 = vld [vmem:[%s1522] sm:$0xff]
  %v1524 = vld [vmem:[%s1522 + $0x8] sm:$0xff]
  %v1525 = vld [vmem:[%s1522 + $0x10] sm:$0xff]
  %v1526 = vld [vmem:[%s1522 + $0x18] sm:$0xff]
  %v1527 = vpack.c.bf16 %v1498, %v1497
  %v1528 = vpack.c.bf16 %v1500, %v1499
  %1531 = vrot.lane.b32.xlu0 %v1527, 64
  %v1532 = vpop.permute.xlu0 %1531
  %1533 = vrot.lane.b32.xlu0 %v1528, 64
  %v1534 = vpop.permute.xlu0 %1533
  %v1536 = vsel %vm404, %v1532, 0
  %v1539 = vsel %vm404, %v1534, 0
  %1541 = vmatprep.subr.bf16.mxu0 0
  %1542 = vmatpush1.bf16.msra.mxu0 %v400
  %1543 = vmatprep.subr.bf16.mxu0 0
  %1544 = vmatpush1.bf16.msra.mxu0 %v401
  %1545 = vmatprep.subr.bf16.mxu0 0
  %1546 = vmatpush1.bf16.msra.mxu0 0
  %1547 = vmatprep.subr.bf16.mxu0 0
  %1548 = vmatpush1.bf16.msra.mxu0 0
  %1549 = vmatprep.subr.bf16.mxu0 0
  %1550 = vmatpush1.bf16.msra.mxu0 0
  %1551 = vmatprep.subr.bf16.mxu0 0
  %1552 = vmatpush1.bf16.msra.mxu0 0
  %1553 = vmatprep.subr.bf16.mxu0 0
  %1554 = vmatpush1.bf16.msra.mxu0 0
  %1555 = vmatprep.subr.bf16.mxu0 0
  %1556 = vmatpush1.bf16.msra.mxu0 0
  %1557 = vmatprep.subr.bf16.mxu0 0
  %1558 = vmatpush1.bf16.msra.mxu0 0
  %1559 = vmatprep.subr.bf16.mxu0 0
  %1560 = vmatpush1.bf16.msra.mxu0 0
  %1561 = vmatprep.subr.bf16.mxu0 0
  %1562 = vmatpush1.bf16.msra.mxu0 0
  %1563 = vmatprep.subr.bf16.mxu0 0
  %1564 = vmatpush1.bf16.msra.mxu0 0
  %1565 = vmatprep.subr.bf16.mxu0 0
  %1566 = vmatpush1.bf16.msra.mxu0 0
  %1567 = vmatprep.subr.bf16.mxu0 0
  %1568 = vmatpush1.bf16.msra.mxu0 0
  %1569 = vmatprep.subr.bf16.mxu0 0
  %1570 = vmatpush1.bf16.msra.mxu0 0
  %1571 = vmatprep.subr.bf16.mxu0 0
  %1572 = vmatpush1.bf16.msra.mxu0 0
  %1573 = vmatprep.mubr.bf16.mxu0 0
  %1574 = vmatmul.mubr.bf16.gmra.mrb[0].mxu0 %v1536
  %v1575 = vpop.f32.mrb[0].mxu0
  %v1576 = vadd.f32 0.0, %v1575
  %v1577 = vpop.f32.mrb[0].mxu0
  %v1578 = vpop.f32.mrb[0].mxu0
  %v1579 = vadd.f32 0.0, %v1578
  %v1580 = vpop.f32.mrb[0].mxu0
  %1581 = vmatprep.mubr.bf16.mxu0 0
  %1582 = vmatmul.mubr.bf16.gmra.mrb[0].mxu0 %v1539
  %v1583 = vpop.f32.mrb[0].mxu0
  %v1584 = vadd.f32 0.0, %v1583
  %v1585 = vpop.f32.mrb[0].mxu0
  %v1586 = vpop.f32.mrb[0].mxu0
  %v1587 = vadd.f32 0.0, %v1586
  %v1588 = vpop.f32.mrb[0].mxu0
  %1589 = vdwg.mxu0
  %v1590 = vadd.f32 %v1523, %v1576
  %v1591 = vadd.f32 %v1524, %v1579
  %v1592 = vadd.f32 %v1525, %v1584
  %v1593 = vadd.f32 %v1526, %v1587
  %v1594 = vxor.u32 %v1590, 2147483648
  %v1595 = vxor.u32 %v1591, 2147483648
  %v1596 = vxor.u32 %v1592, 2147483648
  %v1597 = vxor.u32 %v1593, 2147483648
  %v1598 = vmul.f32 %v1594, 1.442695
  %v1599 = vpow.pop %v1598
  %v1600 = vmul.f32 %v1595, 1.442695
  %v1601 = vpow.pop %v1600
  %v1602 = vmul.f32 %v1596, 1.442695
  %v1603 = vpow.pop %v1602
  %v1604 = vmul.f32 %v1597, 1.442695
  %v1605 = vpow.pop %v1604
  %v1606 = vadd.f32 %v1599, 1.0
  %v1607 = vadd.f32 %v1601, 1.0
  %v1608 = vadd.f32 %v1603, 1.0
  %v1609 = vadd.f32 %v1605, 1.0
  %v1610 = vrcp.pop %v1606
  %v1611 = vmul.f32 1.0, %v1610
  %v1612 = vrcp.pop %v1607
  %v1613 = vmul.f32 1.0, %v1612
  %v1614 = vrcp.pop %v1608
  %v1615 = vmul.f32 1.0, %v1614
  %v1616 = vrcp.pop %v1609
  %v1617 = vmul.f32 1.0, %v1616
  %v1618 = vtanh.pop %v1590
  %v1619 = vtanh.pop %v1591
  %v1620 = vtanh.pop %v1592
  %v1621 = vtanh.pop %v1593
  %v1622 = vmul.f32 %v1611, %v1473
  %v1623 = vmul.f32 %v1613, %v1474
  %v1624 = vmul.f32 %v1615, %v1475
  %v1625 = vmul.f32 %v1617, %v1476
  %1630 = vrot.lane.b32.xlu0 %v1618, 32
  %v1631 = vpop.permute.xlu0 %1630
  %1632 = vrot.lane.b32.xlu0 %v1619, 32
  %v1633 = vpop.permute.xlu0 %1632
  %1634 = vrot.lane.b32.xlu0 %v1620, 32
  %v1635 = vpop.permute.xlu0 %1634
  %1636 = vrot.lane.b32.xlu0 %v1621, 32
  %v1637 = vpop.permute.xlu0 %1636
  %v1642 = vmul.f32 %v1611, %v1631
  %v1643 = vmul.f32 %v1613, %v1633
  %v1644 = vmul.f32 %v1615, %v1635
  %v1645 = vmul.f32 %v1617, %v1637
  %1650 = vrot.lane.b32.xlu0 %v1642, 32
  %v1651 = vpop.permute.xlu0 %1650
  %1652 = vrot.lane.b32.xlu0 %v1643, 32
  %v1653 = vpop.permute.xlu0 %1652
  %1654 = vrot.lane.b32.xlu0 %v1644, 32
  %v1655 = vpop.permute.xlu0 %1654
  %1656 = vrot.lane.b32.xlu0 %v1645, 32
  %v1657 = vpop.permute.xlu0 %1656
  %v1662 = vadd.f32 %v1622, %v1651
  %v1663 = vadd.f32 %v1623, %v1653
  %v1664 = vadd.f32 %v1624, %v1655
  %v1665 = vadd.f32 %v1625, %v1657
  %v1666 = vtanh.pop %v1662
  %v1667 = vtanh.pop %v1663
  %v1668 = vtanh.pop %v1664
  %v1669 = vtanh.pop %v1665
  %1674 = vrot.lane.b32.xlu0 %v1666, 32
  %v1675 = vpop.permute.xlu0 %1674
  %1676 = vrot.lane.b32.xlu0 %v1667, 32
  %v1677 = vpop.permute.xlu0 %1676
  %1678 = vrot.lane.b32.xlu0 %v1668, 32
  %v1679 = vpop.permute.xlu0 %1678
  %1680 = vrot.lane.b32.xlu0 %v1669, 32
  %v1681 = vpop.permute.xlu0 %1680
  %v1686 = vmul.f32 %v1611, %v1675
  %v1687 = vmul.f32 %v1613, %v1677
  %v1688 = vmul.f32 %v1615, %v1679
  %v1689 = vmul.f32 %v1617, %v1681
  %1694 = vrot.lane.b32.xlu0 %v1686, 64
  %v1695 = vpop.permute.xlu0 %1694
  %1696 = vrot.lane.b32.xlu0 %v1687, 64
  %v1697 = vpop.permute.xlu0 %1696
  %1698 = vrot.lane.b32.xlu0 %v1688, 64
  %v1699 = vpop.permute.xlu0 %1698
  %1700 = vrot.lane.b32.xlu0 %v1689, 64
  %v1701 = vpop.permute.xlu0 %1700
  %s1706 = scalar_lea.vmem [#allocation3], 192
  %1707 = vst.msk [vmem:[%s1706] sm:$0xff] %vm404, %v1695
  %1708 = vst.msk [vmem:[%s1706 + $0x8] sm:$0xff] %vm404, %v1697
  %1709 = vst.msk [vmem:[%s1706 + $0x10] sm:$0xff] %vm404, %v1699
  %1710 = vst.msk [vmem:[%s1706 + $0x18] sm:$0xff] %vm404, %v1701
  %s1711 = scalar_lea.vmem [#allocation2], 224
  %v1712 = vld [vmem:[%s1711] sm:$0xff]
  %v1713 = vld [vmem:[%s1711 + $0x8] sm:$0xff]
  %v1714 = vld [vmem:[%s1711 + $0x10] sm:$0xff]
  %v1715 = vld [vmem:[%s1711 + $0x18] sm:$0xff]
  %v1716 = vpack.c.bf16 %v1687, %v1686
  %v1717 = vpack.c.bf16 %v1689, %v1688
  %1720 = vrot.lane.b32.xlu0 %v1716, 64
  %v1721 = vpop.permute.xlu0 %1720
  %1722 = vrot.lane.b32.xlu0 %v1717, 64
  %v1723 = vpop.permute.xlu0 %1722
  %v1725 = vsel %vm404, %v1721, 0
  %v1728 = vsel %vm404, %v1723, 0
  %1730 = vmatprep.subr.bf16.mxu0 0
  %1731 = vmatpush1.bf16.msra.mxu0 %v400
  %1732 = vmatprep.subr.bf16.mxu0 0
  %1733 = vmatpush1.bf16.msra.mxu0 %v401
  %1734 = vmatprep.subr.bf16.mxu0 0
  %1735 = vmatpush1.bf16.msra.mxu0 0
  %1736 = vmatprep.subr.bf16.mxu0 0
  %1737 = vmatpush1.bf16.msra.mxu0 0
  %1738 = vmatprep.subr.bf16.mxu0 0
  %1739 = vmatpush1.bf16.msra.mxu0 0
  %1740 = vmatprep.subr.bf16.mxu0 0
  %1741 = vmatpush1.bf16.msra.mxu0 0
  %1742 = vmatprep.subr.bf16.mxu0 0
  %1743 = vmatpush1.bf16.msra.mxu0 0
  %1744 = vmatprep.subr.bf16.mxu0 0
  %1745 = vmatpush1.bf16.msra.mxu0 0
  %1746 = vmatprep.subr.bf16.mxu0 0
  %1747 = vmatpush1.bf16.msra.mxu0 0
  %1748 = vmatprep.subr.bf16.mxu0 0
  %1749 = vmatpush1.bf16.msra.mxu0 0
  %1750 = vmatprep.subr.bf16.mxu0 0
  %1751 = vmatpush1.bf16.msra.mxu0 0
  %1752 = vmatprep.subr.bf16.mxu0 0
  %1753 = vmatpush1.bf16.msra.mxu0 0
  %1754 = vmatprep.subr.bf16.mxu0 0
  %1755 = vmatpush1.bf16.msra.mxu0 0
  %1756 = vmatprep.subr.bf16.mxu0 0
  %1757 = vmatpush1.bf16.msra.mxu0 0
  %1758 = vmatprep.subr.bf16.mxu0 0
  %1759 = vmatpush1.bf16.msra.mxu0 0
  %1760 = vmatprep.subr.bf16.mxu0 0
  %1761 = vmatpush1.bf16.msra.mxu0 0
  %1762 = vmatprep.mubr.bf16.mxu0 0
  %1763 = vmatmul.mubr.bf16.gmra.mrb[0].mxu0 %v1725
  %v1764 = vpop.f32.mrb[0].mxu0
  %v1765 = vadd.f32 0.0, %v1764
  %v1766 = vpop.f32.mrb[0].mxu0
  %v1767 = vpop.f32.mrb[0].mxu0
  %v1768 = vadd.f32 0.0, %v1767
  %v1769 = vpop.f32.mrb[0].mxu0
  %1770 = vmatprep.mubr.bf16.mxu0 0
  %1771 = vmatmul.mubr.bf16.gmra.mrb[0].mxu0 %v1728
  %v1772 = vpop.f32.mrb[0].mxu0
  %v1773 = vadd.f32 0.0, %v1772
  %v1774 = vpop.f32.mrb[0].mxu0
  %v1775 = vpop.f32.mrb[0].mxu0
  %v1776 = vadd.f32 0.0, %v1775
  %v1777 = vpop.f32.mrb[0].mxu0
  %1778 = vdwg.mxu0
  %v1779 = vadd.f32 %v1712, %v1765
  %v1780 = vadd.f32 %v1713, %v1768
  %v1781 = vadd.f32 %v1714, %v1773
  %v1782 = vadd.f32 %v1715, %v1776
  %v1783 = vxor.u32 %v1779, 2147483648
  %v1784 = vxor.u32 %v1780, 2147483648
  %v1785 = vxor.u32 %v1781, 2147483648
  %v1786 = vxor.u32 %v1782, 2147483648
  %v1787 = vmul.f32 %v1783, 1.442695
  %v1788 = vpow.pop %v1787
  %v1789 = vmul.f32 %v1784, 1.442695
  %v1790 = vpow.pop %v1789
  %v1791 = vmul.f32 %v1785, 1.442695
  %v1792 = vpow.pop %v1791
  %v1793 = vmul.f32 %v1786, 1.442695
  %v1794 = vpow.pop %v1793
  %v1795 = vadd.f32 %v1788, 1.0
  %v1796 = vadd.f32 %v1790, 1.0
  %v1797 = vadd.f32 %v1792, 1.0
  %v1798 = vadd.f32 %v1794, 1.0
  %v1799 = vrcp.pop %v1795
  %v1800 = vmul.f32 1.0, %v1799
  %v1801 = vrcp.pop %v1796
  %v1802 = vmul.f32 1.0, %v1801
  %v1803 = vrcp.pop %v1797
  %v1804 = vmul.f32 1.0, %v1803
  %v1805 = vrcp.pop %v1798
  %v1806 = vmul.f32 1.0, %v1805
  %v1807 = vtanh.pop %v1779
  %v1808 = vtanh.pop %v1780
  %v1809 = vtanh.pop %v1781
  %v1810 = vtanh.pop %v1782
  %v1811 = vmul.f32 %v1800, %v1662
  %v1812 = vmul.f32 %v1802, %v1663
  %v1813 = vmul.f32 %v1804, %v1664
  %v1814 = vmul.f32 %v1806, %v1665
  %1819 = vrot.lane.b32.xlu0 %v1807, 32
  %v1820 = vpop.permute.xlu0 %1819
  %1821 = vrot.lane.b32.xlu0 %v1808, 32
  %v1822 = vpop.permute.xlu0 %1821
  %1823 = vrot.lane.b32.xlu0 %v1809, 32
  %v1824 = vpop.permute.xlu0 %1823
  %1825 = vrot.lane.b32.xlu0 %v1810, 32
  %v1826 = vpop.permute.xlu0 %1825
  %v1831 = vmul.f32 %v1800, %v1820
  %v1832 = vmul.f32 %v1802, %v1822
  %v1833 = vmul.f32 %v1804, %v1824
  %v1834 = vmul.f32 %v1806, %v1826
  %1839 = vrot.lane.b32.xlu0 %v1831, 32
  %v1840 = vpop.permute.xlu0 %1839
  %1841 = vrot.lane.b32.xlu0 %v1832, 32
  %v1842 = vpop.permute.xlu0 %1841
  %1843 = vrot.lane.b32.xlu0 %v1833, 32
  %v1844 = vpop.permute.xlu0 %1843
  %1845 = vrot.lane.b32.xlu0 %v1834, 32
  %v1846 = vpop.permute.xlu0 %1845
  %v1851 = vadd.f32 %v1811, %v1840
  %v1852 = vadd.f32 %v1812, %v1842
  %v1853 = vadd.f32 %v1813, %v1844
  %v1854 = vadd.f32 %v1814, %v1846
  %v1855 = vtanh.pop %v1851
  %v1856 = vtanh.pop %v1852
  %v1857 = vtanh.pop %v1853
  %v1858 = vtanh.pop %v1854
  %1863 = vrot.lane.b32.xlu0 %v1855, 32
  %v1864 = vpop.permute.xlu0 %1863
  %1865 = vrot.lane.b32.xlu0 %v1856, 32
  %v1866 = vpop.permute.xlu0 %1865
  %1867 = vrot.lane.b32.xlu0 %v1857, 32
  %v1868 = vpop.permute.xlu0 %1867
  %1869 = vrot.lane.b32.xlu0 %v1858, 32
  %v1870 = vpop.permute.xlu0 %1869
  %v1875 = vmul.f32 %v1800, %v1864
  %v1876 = vmul.f32 %v1802, %v1866
  %v1877 = vmul.f32 %v1804, %v1868
  %v1878 = vmul.f32 %v1806, %v1870
  %1883 = vrot.lane.b32.xlu0 %v1875, 64
  %v1884 = vpop.permute.xlu0 %1883
  %1885 = vrot.lane.b32.xlu0 %v1876, 64
  %v1886 = vpop.permute.xlu0 %1885
  %1887 = vrot.lane.b32.xlu0 %v1877, 64
  %v1888 = vpop.permute.xlu0 %1887
  %1889 = vrot.lane.b32.xlu0 %v1878, 64
  %v1890 = vpop.permute.xlu0 %1889
  %s1895 = scalar_lea.vmem [#allocation3], 224
  %1896 = vst.msk [vmem:[%s1895] sm:$0xff] %vm404, %v1884
  %1897 = vst.msk [vmem:[%s1895 + $0x8] sm:$0xff] %vm404, %v1886
  %1898 = vst.msk [vmem:[%s1895 + $0x10] sm:$0xff] %vm404, %v1888
  %1899 = vst.msk [vmem:[%s1895 + $0x18] sm:$0xff] %vm404, %v1890
  %v1900 = vld [vmem:[#allocation3] sm:$0xff]
  %v1901 = vld [vmem:[#allocation3 + $0x8] sm:$0xff]
  %v1902 = vld [vmem:[#allocation3 + $0x10] sm:$0xff]
  %v1903 = vld [vmem:[#allocation3 + $0x18] sm:$0xff]
  %v1904 = vld [vmem:[#allocation3 + $0x20] sm:$0xff]
  %v1905 = vld [vmem:[#allocation3 + $0x28] sm:$0xff]
  %v1906 = vld [vmem:[#allocation3 + $0x30] sm:$0xff]
  %v1907 = vld [vmem:[#allocation3 + $0x38] sm:$0xff]
  %v1908 = vld [vmem:[#allocation3 + $0x40] sm:$0xff]
  %v1909 = vld [vmem:[#allocation3 + $0x48] sm:$0xff]
  %v1910 = vld [vmem:[#allocation3 + $0x50] sm:$0xff]
  %v1911 = vld [vmem:[#allocation3 + $0x58] sm:$0xff]
  %v1912 = vld [vmem:[#allocation3 + $0x60] sm:$0xff]
  %v1913 = vld [vmem:[#allocation3 + $0x68] sm:$0xff]
  %v1914 = vld [vmem:[#allocation3 + $0x70] sm:$0xff]
  %v1915 = vld [vmem:[#allocation3 + $0x78] sm:$0xff]
  %v1916 = vld [vmem:[#allocation3 + $0x80] sm:$0xff]
  %v1917 = vld [vmem:[#allocation3 + $0x88] sm:$0xff]
  %v1918 = vld [vmem:[#allocation3 + $0x90] sm:$0xff]
  %v1919 = vld [vmem:[#allocation3 + $0x98] sm:$0xff]
  %v1920 = vld [vmem:[#allocation3 + $0xa0] sm:$0xff]
  %v1921 = vld [vmem:[#allocation3 + $0xa8] sm:$0xff]
  %v1922 = vld [vmem:[#allocation3 + $0xb0] sm:$0xff]
  %v1923 = vld [vmem:[#allocation3 + $0xb8] sm:$0xff]
  %v1924 = vld [vmem:[#allocation3 + $0xc0] sm:$0xff]
  %v1925 = vld [vmem:[#allocation3 + $0xc8] sm:$0xff]
  %v1926 = vld [vmem:[#allocation3 + $0xd0] sm:$0xff]
  %v1927 = vld [vmem:[#allocation3 + $0xd8] sm:$0xff]
  %v1928 = vld [vmem:[#allocation3 + $0xe0] sm:$0xff]
  %v1929 = vld [vmem:[#allocation3 + $0xe8] sm:$0xff]
  %v1930 = vld [vmem:[#allocation3 + $0xf0] sm:$0xff]
  %v1931 = vld [vmem:[#allocation3 + $0xf8] sm:$0xff]
  %vm1932 = vcmask 130048
  %1933 = vst.msk [vmem:[%s4] sm:$0xff] %vm1932, %v1900
  %1934 = vst.msk [vmem:[%s4 + $0x8] sm:$0xff] %vm1932, %v1901
  %1935 = vst.msk [vmem:[%s4 + $0x10] sm:$0xff] %vm1932, %v1902
  %1936 = vst.msk [vmem:[%s4 + $0x18] sm:$0xff] %vm1932, %v1903
  %1937 = vst.msk [vmem:[%s4 + $0x20] sm:$0xff] %vm1932, %v1904
  %1938 = vst.msk [vmem:[%s4 + $0x28] sm:$0xff] %vm1932, %v1905
  %1939 = vst.msk [vmem:[%s4 + $0x30] sm:$0xff] %vm1932, %v1906
  %1940 = vst.msk [vmem:[%s4 + $0x38] sm:$0xff] %vm1932, %v1907
  %1941 = vst.msk [vmem:[%s4 + $0x40] sm:$0xff] %vm1932, %v1908
  %1942 = vst.msk [vmem:[%s4 + $0x48] sm:$0xff] %vm1932, %v1909
  %1943 = vst.msk [vmem:[%s4 + $0x50] sm:$0xff] %vm1932, %v1910
  %1944 = vst.msk [vmem:[%s4 + $0x58] sm:$0xff] %vm1932, %v1911
  %1945 = vst.msk [vmem:[%s4 + $0x60] sm:$0xff] %vm1932, %v1912
  %1946 = vst.msk [vmem:[%s4 + $0x68] sm:$0xff] %vm1932, %v1913
  %1947 = vst.msk [vmem:[%s4 + $0x70] sm:$0xff] %vm1932, %v1914
  %1948 = vst.msk [vmem:[%s4 + $0x78] sm:$0xff] %vm1932, %v1915
  %1949 = vst.msk [vmem:[%s4 + $0x80] sm:$0xff] %vm1932, %v1916
  %1950 = vst.msk [vmem:[%s4 + $0x88] sm:$0xff] %vm1932, %v1917
  %1951 = vst.msk [vmem:[%s4 + $0x90] sm:$0xff] %vm1932, %v1918
  %1952 = vst.msk [vmem:[%s4 + $0x98] sm:$0xff] %vm1932, %v1919
  %1953 = vst.msk [vmem:[%s4 + $0xa0] sm:$0xff] %vm1932, %v1920
  %1954 = vst.msk [vmem:[%s4 + $0xa8] sm:$0xff] %vm1932, %v1921
  %1955 = vst.msk [vmem:[%s4 + $0xb0] sm:$0xff] %vm1932, %v1922
  %1956 = vst.msk [vmem:[%s4 + $0xb8] sm:$0xff] %vm1932, %v1923
  %1957 = vst.msk [vmem:[%s4 + $0xc0] sm:$0xff] %vm1932, %v1924
  %1958 = vst.msk [vmem:[%s4 + $0xc8] sm:$0xff] %vm1932, %v1925
  %1959 = vst.msk [vmem:[%s4 + $0xd0] sm:$0xff] %vm1932, %v1926
  %1960 = vst.msk [vmem:[%s4 + $0xd8] sm:$0xff] %vm1932, %v1927
  %1961 = vst.msk [vmem:[%s4 + $0xe0] sm:$0xff] %vm1932, %v1928
  %1962 = vst.msk [vmem:[%s4 + $0xe8] sm:$0xff] %vm1932, %v1929
  %1963 = vst.msk [vmem:[%s4 + $0xf0] sm:$0xff] %vm1932, %v1930
  %1964 = vst.msk [vmem:[%s4 + $0xf8] sm:$0xff] %vm1932, %v1931
  %v1965 = vld [vmem:[%s1895] sm:$0xff]
  %v1966 = vld [vmem:[%s1895 + $0x8] sm:$0xff]
  %v1967 = vld [vmem:[%s1895 + $0x10] sm:$0xff]
  %v1968 = vld [vmem:[%s1895 + $0x18] sm:$0xff]
  %vm1969 = vcmask 261248
  %1970 = vst.msk [vmem:[%s4] sm:$0xff] %vm1969, %v1965
  %1971 = vst.msk [vmem:[%s4 + $0x8] sm:$0xff] %vm1969, %v1966
  %1972 = vst.msk [vmem:[%s4 + $0x10] sm:$0xff] %vm1969, %v1967
  %1973 = vst.msk [vmem:[%s4 + $0x18] sm:$0xff] %vm1969, %v1968
  %v1974 = vld [vmem:[%s1706] sm:$0xff]
  %v1975 = vld [vmem:[%s1706 + $0x8] sm:$0xff]
  %v1976 = vld [vmem:[%s1706 + $0x10] sm:$0xff]
  %v1977 = vld [vmem:[%s1706 + $0x18] sm:$0xff]
  %s1978 = scalar_lea.vmem %s4, 32
  %1979 = vst.msk [vmem:[%s1978] sm:$0xff] %vm1969, %v1974
  %1980 = vst.msk [vmem:[%s1978 + $0x8] sm:$0xff] %vm1969, %v1975
  %1981 = vst.msk [vmem:[%s1978 + $0x10] sm:$0xff] %vm1969, %v1976
  %1982 = vst.msk [vmem:[%s1978 + $0x18] sm:$0xff] %vm1969, %v1977
  %v1983 = vld [vmem:[%s1517] sm:$0xff]
  %v1984 = vld [vmem:[%s1517 + $0x8] sm:$0xff]
  %v1985 = vld [vmem:[%s1517 + $0x10] sm:$0xff]
  %v1986 = vld [vmem:[%s1517 + $0x18] sm:$0xff]
  %s1987 = scalar_lea.vmem %s4, 64
  %1988 = vst.msk [vmem:[%s1987] sm:$0xff] %vm1969, %v1983
  %1989 = vst.msk [vmem:[%s1987 + $0x8] sm:$0xff] %vm1969, %v1984
  %1990 = vst.msk [vmem:[%s1987 + $0x10] sm:$0xff] %vm1969, %v1985
  %1991 = vst.msk [vmem:[%s1987 + $0x18] sm:$0xff] %vm1969, %v1986
  %v1992 = vld [vmem:[%s1328] sm:$0xff]
  %v1993 = vld [vmem:[%s1328 + $0x8] sm:$0xff]
  %v1994 = vld [vmem:[%s1328 + $0x10] sm:$0xff]
  %v1995 = vld [vmem:[%s1328 + $0x18] sm:$0xff]
  %s1996 = scalar_lea.vmem %s4, 96
  %1997 = vst.msk [vmem:[%s1996] sm:$0xff] %vm1969, %v1992
  %1998 = vst.msk [vmem:[%s1996 + $0x8] sm:$0xff] %vm1969, %v1993
  %1999 = vst.msk [vmem:[%s1996 + $0x10] sm:$0xff] %vm1969, %v1994
  %2000 = vst.msk [vmem:[%s1996 + $0x18] sm:$0xff] %vm1969, %v1995
  %v2001 = vld [vmem:[%s1139] sm:$0xff]
  %v2002 = vld [vmem:[%s1139 + $0x8] sm:$0xff]
  %v2003 = vld [vmem:[%s1139 + $0x10] sm:$0xff]
  %v2004 = vld [vmem:[%s1139 + $0x18] sm:$0xff]
  %s2005 = scalar_lea.vmem %s4, 128
  %2006 = vst.msk [vmem:[%s2005] sm:$0xff] %vm1969, %v2001
  %2007 = vst.msk [vmem:[%s2005 + $0x8] sm:$0xff] %vm1969, %v2002
  %2008 = vst.msk [vmem:[%s2005 + $0x10] sm:$0xff] %vm1969, %v2003
  %2009 = vst.msk [vmem:[%s2005 + $0x18] sm:$0xff] %vm1969, %v2004
  %v2010 = vld [vmem:[%s950] sm:$0xff]
  %v2011 = vld [vmem:[%s950 + $0x8] sm:$0xff]
  %v2012 = vld [vmem:[%s950 + $0x10] sm:$0xff]
  %v2013 = vld [vmem:[%s950 + $0x18] sm:$0xff]
  %s2014 = scalar_lea.vmem %s4, 160
  %2015 = vst.msk [vmem:[%s2014] sm:$0xff] %vm1969, %v2010
  %2016 = vst.msk [vmem:[%s2014 + $0x8] sm:$0xff] %vm1969, %v2011
  %2017 = vst.msk [vmem:[%s2014 + $0x10] sm:$0xff] %vm1969, %v2012
  %2018 = vst.msk [vmem:[%s2014 + $0x18] sm:$0xff] %vm1969, %v2013
  %v2019 = vld [vmem:[%s761] sm:$0xff]
  %v2020 = vld [vmem:[%s761 + $0x8] sm:$0xff]
  %v2021 = vld [vmem:[%s761 + $0x10] sm:$0xff]
  %v2022 = vld [vmem:[%s761 + $0x18] sm:$0xff]
  %s2023 = scalar_lea.vmem %s4, 192
  %2024 = vst.msk [vmem:[%s2023] sm:$0xff] %vm1969, %v2019
  %2025 = vst.msk [vmem:[%s2023 + $0x8] sm:$0xff] %vm1969, %v2020
  %2026 = vst.msk [vmem:[%s2023 + $0x10] sm:$0xff] %vm1969, %v2021
  %2027 = vst.msk [vmem:[%s2023 + $0x18] sm:$0xff] %vm1969, %v2022
  %v2028 = vld [vmem:[#allocation3] sm:$0xff]
  %v2029 = vld [vmem:[#allocation3 + $0x8] sm:$0xff]
  %v2030 = vld [vmem:[#allocation3 + $0x10] sm:$0xff]
  %v2031 = vld [vmem:[#allocation3 + $0x18] sm:$0xff]
  %s2032 = scalar_lea.vmem %s4, 224
  %2033 = vst.msk [vmem:[%s2032] sm:$0xff] %vm1969, %v2028
  %2034 = vst.msk [vmem:[%s2032 + $0x8] sm:$0xff] %vm1969, %v2029
  %2035 = vst.msk [vmem:[%s2032 + $0x10] sm:$0xff] %vm1969, %v2030
  %2036 = vst.msk [vmem:[%s2032 + $0x18] sm:$0xff] %vm1969, %v2031
  // Predicated region
  $region18: #{rnn_forward.1} parent=0 // pred_check
    _
  $region19: #{rnn_forward.1} parent=0 // pred_check_branch
    %2038 = sbr.rel (0) target = $region21
  $region20: #{rnn_forward.1} parent=0 // pred_region
    _
  $region21: #{rnn_forward.1} parent=0 // pred_fallthru
    _
  // Predicated region
  $region22: #{rnn_forward.1} parent=0 // pred_check
    _
  $region23: #{rnn_forward.1} parent=0 // pred_check_branch
    %2040 = sbr.rel (0) target = $region25
  $region24: #{rnn_forward.1} parent=0 // pred_region
    _
  $region25: #{rnn_forward.1} parent=0 // pred_fallthru
    _

</llo_original>
